<compile_context>
chip_gen: v6e
topology: v6e:2x2x1
jax: 0.10.0
libtpu: 0.0.40
codegen_flags: <defaults>
</compile_context>

<pallas_src>
import functools

import jax
import jax.numpy as jnp
from jax.experimental import pallas as pl
from jax.experimental.pallas import tpu as pltpu


# ----------------------------------------------------------------------------
# Kernel
# ----------------------------------------------------------------------------
def _decblock_kernel(x_ref, wb1_ref, b1_ref, wb2_ref, b2_ref, out_ref):
    """Fused SimpleResBlock on a block of Bblk images.

    x_ref   : (Bblk, H, W*Cin)        row-flattened NHWC input (no halo)
    wb1_ref : (3, W*Cin,  W*Cout)     banded conv1 weights (BN scale folded)
    b1_ref  : (1, W*Cout)             conv1 BN bias (tiled over W)
    wb2_ref : (3, W*Cout, W*Cout)     banded conv2 weights (BN scale folded)
    b2_ref  : (1, W*Cout)             conv2 BN bias (tiled over W)
    out_ref : (Bblk*H, W*Cout)        lane-dense output
    """
    _, H, WCin = x_ref.shape
    BH, WCout = out_ref.shape

    # Row-in-image index, used to mask dy-shifted contributions at image
    # borders (essential when Bblk > 1; harmless re-zeroing otherwise).
    ri = jax.lax.broadcasted_iota(jnp.int32, (BH, WCout), 0) % H

    def shift_rows(m, d):
        """m'(r) = m(r + d) with zero fill / per-image clipping; d in {-1,+1}."""
        zrow = jnp.zeros((1, WCout), m.dtype)
        if d > 0:
            shifted = jnp.concatenate([m[d:, :], zrow], axis=0)
        else:
            shifted = jnp.concatenate([zrow, m[:d, :]], axis=0)
        valid = jnp.logical_and(ri + d >= 0, ri + d < H)
        return jnp.where(valid, shifted, jnp.zeros_like(shifted))

    def conv3x3_banded(lhs, wb_ref):
        """Pad-1 3x3 conv: the W (dx) axis is folded into the banded weights;
        the H (dy) axis is handled by shifting the three f32 matmul results,
        so the (bf16) lhs is fed to the MXU unshifted and uncopied."""
        acc = jnp.dot(lhs, wb_ref[1], preferred_element_type=jnp.float32)
        acc = acc + shift_rows(
            jnp.dot(lhs, wb_ref[0], preferred_element_type=jnp.float32), -1)
        acc = acc + shift_rows(
            jnp.dot(lhs, wb_ref[2], preferred_element_type=jnp.float32), +1)
        return acc

    x = x_ref[...].reshape(BH, WCin)                    # contiguous, free

    # conv1 + folded BN + ReLU (f32 accumulate / f32 elementwise)
    h = jnp.maximum(conv3x3_banded(x, wb1_ref) + b1_ref[...], 0.0)

    # conv2 + folded BN (lhs cast once to the MXU compute dtype)
    y = conv3x3_banded(h.astype(x.dtype), wb2_ref) + b2_ref[...]

    # residual add + ReLU, single lane-dense store
    out_ref[...] = jnp.maximum(h + y, 0.0).astype(out_ref.dtype)


# ----------------------------------------------------------------------------
# Host-side helpers
# ----------------------------------------------------------------------------
def _fold_bn(gamma, beta, mean, var, eps=1e-5):
    scale = gamma / jnp.sqrt(var + eps)
    return scale, beta - mean * scale


def _band_conv_weights(w_hwio, W, scale):
    """Fold a pad-1 3x3 conv (HWIO) + per-channel BN scale into 3 banded mats.

    Returns wb with shape (3, W*Ci, W*Co) such that
        wb[dy, wi*Ci + c, wo*Co + o] = w[dy, wi-wo+1, c, o] * scale[o]
    when 0 <= wi-wo+1 <= 2 and 0 otherwise (the W-direction zero padding is
    absorbed by clipping the band at the edges).  Built in f32; cast later.
    """
    kh, kw, Ci, Co = w_hwio.shape
    w_scaled = w_hwio * scale[None, None, None, :]
    shift = jnp.stack(
        [jnp.eye(W, W, k=dx - 1, dtype=w_hwio.dtype) for dx in range(kw)], 0)
    band = jnp.einsum('xpq,yxco->yqcpo', shift, w_scaled)
    return band.reshape(kh, W * Ci, W * Co)


def _vmem_budget_bytes():
    """Generation-aware VMEM target: ~3/4 of physical, capped at 96 MiB
    (v5e/v6e: 128 MiB physical -> 96 MiB, v7x: 64 MiB -> 48 MiB)."""
    try:
        cap = int(pltpu.get_tpu_info().vmem_capacity_bytes)
    except Exception:
        cap = 64 << 20                       # conservative (v7x per-core) fallback
    return min((cap * 3) // 4, 96 << 20)


def _pick_bblk(B, H, W, Cin, Cout, itemsize, vmem_budget):
    """Largest batch block whose accounted footprint fits the VMEM budget,
    preferring >=2 grid steps (keeps both v7x TensorCores busy and gives the
    pipeline something to overlap), then an even step count, then the largest
    M = bblk*H (MXU utilisation on v6e/v7x), capped so accumulators don't
    force vreg spills."""
    weight_bytes = (2 * itemsize * 3 * W * (Cin + Cout) * W * Cout   # wb1+wb2, 2x buf
                    + 2 * 4 * 2 * W * Cout)                          # biases, 2x buf

    def fits(bblk):
        x_blk = 2 * itemsize * bblk * H * W * Cin          # double-buffered input
        o_blk = 2 * 4 * bblk * H * W * Cout                # double-buffered output
        live = bblk * H * W * Cout * (4 * 4 + itemsize)    # f32 acc/h/y + bf16 h
        return weight_bytes + x_blk + o_blk + live <= vmem_budget

    m_cap = max(H, 512)                                    # vreg-pressure cap on M
    cands = [b for b in range(1, B + 1)
             if B % b == 0 and ((b * H) % 8 == 0 or b == B)
             and b * H <= m_cap and fits(b)]
    if not cands:
        # TODO(synk): add H-tiling with a 1-row halo index_map for configs
        # where even bblk = 1 does not fit the VMEM budget.
        return 1
    multi = [b for b in cands if B // b >= 2] or cands
    even = [b for b in multi if (B // b) % 2 == 0] or multi
    return max(even)


# ----------------------------------------------------------------------------
# Forward wrapper
# ----------------------------------------------------------------------------
@functools.partial(jax.jit, static_argnames=("compute_dtype",))
def decblock_forward(x1, x2, params, *, compute_dtype=jnp.bfloat16):
    """x1: (B, C1, H, W), x2: (B, C2, H2, W2), NCHW.  Returns NCHW float32."""
    B, C1, H, W = x1.shape
    _, C2, H2, W2 = x2.shape
    Cin = C1 + C2
    Cout = params["w1"].shape[3]
    cdt = jnp.dtype(compute_dtype)

    # --- nearest-neighbour resize of x2 to (H, W) ----------------------------
    if H % H2 == 0 and W % W2 == 0:
        x2r = jnp.repeat(jnp.repeat(x2, H // H2, axis=2), W // W2, axis=3)
    else:
        ih = (jnp.arange(H) * H2) // H        # floor(i * in / out) == PyTorch
        iw = (jnp.arange(W) * W2) // W
        x2r = x2[:, :, ih[:, None], iw[None, :]]

    # --- concat channels, NHWC, row-flatten (no H halo: handled in-kernel) ---
    x = jnp.concatenate([x1, x2r], axis=1)                       # (B,Cin,H,W)
    x_rows = (jnp.transpose(x, (0, 2, 3, 1))
              .reshape(B, H, W * Cin).astype(cdt))               # (B,H,W*Cin)
    # TODO(synk): accept/produce NHWC (and optionally bf16 output) to drop the
    #             two wrapper-side HBM transposes for bandwidth-bound configs.

    # --- fold BN scale into banded weights (f32), then cast for the MXU ------
    wb1 = _band_conv_weights(params["w1"], W, params["s1"]).astype(cdt)
    wb2 = _band_conv_weights(params["w2"], W, params["s2"]).astype(cdt)
    bias1 = jnp.tile(params["b1"], W).reshape(1, W * Cout).astype(jnp.float32)
    bias2 = jnp.tile(params["b2"], W).reshape(1, W * Cout).astype(jnp.float32)

    # --- generation-aware VMEM budget and batch-block selection --------------
    vmem_budget = _vmem_budget_bytes()
    bblk = _pick_bblk(B, H, W, Cin, Cout, cdt.itemsize, vmem_budget)

    out_flat = pl.pallas_call(
        _decblock_kernel,
        out_shape=jax.ShapeDtypeStruct((B * H, W * Cout), jnp.float32),
        grid=(B // bblk,),
        in_specs=[
            pl.BlockSpec((bblk, H, W * Cin), lambda b: (b, 0, 0)),
            # Constant index maps -> weights/biases DMA'd once, kept resident.
            pl.BlockSpec((3, W * Cin, W * Cout), lambda b: (0, 0, 0)),
            pl.BlockSpec((1, W * Cout), lambda b: (0, 0)),
            pl.BlockSpec((3, W * Cout, W * Cout), lambda b: (0, 0, 0)),
            pl.BlockSpec((1, W * Cout), lambda b: (0, 0)),
        ],
        out_specs=pl.BlockSpec((bblk * H, W * Cout), lambda b: (b, 0)),
        compiler_params=pltpu.CompilerParams(
            dimension_semantics=("parallel",),
            vmem_limit_bytes=vmem_budget),
    )(x_rows, wb1, bias1, wb2, bias2)

    out = out_flat.reshape(B, H, W, Cout)
    return jnp.transpose(out, (0, 3, 1, 2)).astype(jnp.float32)   # back to NCHW


# ----------------------------------------------------------------------------
# Parameters & reference
# ----------------------------------------------------------------------------
def init_params(key, in_ch1, in_ch2, out_ch):
    """Conv weights in HWIO, BatchNorm (inference) folded to scale/bias."""
    cin = in_ch1 + in_ch2
    ks = jax.random.split(key, 10)

    def conv_w(k, ci, co):
        w_oihw = jax.random.normal(k, (co, ci, 3, 3), jnp.float32) * 0.1
        return jnp.transpose(w_oihw, (2, 3, 1, 0))               # -> (3,3,ci,co)

    w1 = conv_w(ks[0], cin, out_ch)
    w2 = conv_w(ks[1], out_ch, out_ch)

    def bn(i):
        gamma = 1.0 + 0.1 * jax.random.normal(ks[i], (out_ch,), jnp.float32)
        beta = 0.1 * jax.random.normal(ks[i + 1], (out_ch,), jnp.float32)
        mean = 0.1 * jax.random.normal(ks[i + 2], (out_ch,), jnp.float32)
        var = 1.0 + 0.1 * jnp.abs(
            jax.random.normal(ks[i + 3], (out_ch,), jnp.float32))
        return _fold_bn(gamma, beta, mean, var)

    s1, b1 = bn(2)
    s2, b2 = bn(6)
    return {"w1": w1, "s1": s1, "b1": b1, "w2": w2, "s2": s2, "b2": b2}


def _reference_forward(x1, x2, params):
    """Pure-XLA f32 reference (same math as the PyTorch module, BN folded)."""
    B, C1, H, W = x1.shape
    _, C2, H2, W2 = x2.shape
    ih = (jnp.arange(H) * H2) // H
    iw = (jnp.arange(W) * W2) // W
    x2r = x2[:, :, ih[:, None], iw[None, :]]
    x = jnp.concatenate([x1, x2r], axis=1)

    def conv_bn(inp, w_hwio, s, b):
        y = jax.lax.conv_general_dilated(
            inp, w_hwio, window_strides=(1, 1), padding=((1, 1), (1, 1)),
            dimension_numbers=("NCHW", "HWIO", "NCHW"))
        return y * s[None, :, None, None] + b[None, :, None, None]

    h = jax.nn.relu(conv_bn(x, params["w1"], params["s1"], params["b1"]))
    y = conv_bn(h, params["w2"], params["s2"], params["b2"])
    return jax.nn.relu(h + y)


if __name__ == "__main__":
    key = jax.random.PRNGKey(0)
    k1, k2, kp = jax.random.split(key, 3)

    B, C1, H, W = 4, 4, 16, 16        # high-res decoder feature x1 (NCHW)
    C2, H2, W2 = 6, 8, 8              # low-res feature x2 (upsampled to 16x16)
    out_ch = 8                        # W * out_ch = 128 -> lane-dense output

    x1 = jax.random.normal(k1, (B, C1, H, W), jnp.float32)
    x2 = jax.random.normal(k2, (B, C2, H2, W2), jnp.float32)
    params = init_params(kp, C1, C2, out_ch)

    out = decblock_forward(x1, x2, params)          # default bf16 compute path
    jax.block_until_ready(out)

    assert out.shape == (B, out_ch, H, W), out.shape
    assert bool(jnp.all(out >= 0.0))                # final ReLU

    ref = _reference_forward(x1, x2, params)        # pure f32 reference
    max_err = float(jnp.max(jnp.abs(out - ref)))
    # bf16 inputs/weights with f32 accumulation: expect ~1e-2 abs error
    # (~1-2% of the output scale) vs. the f32 reference.
    assert max_err < 6e-2, f"max abs error {max_err}"

    print("KERNEL_OK")
</pallas_src>

<mosaic_0001>
module attributes {stable_mosaic.version = 11 : i64} {
  func.func @_decblock_kernel(%arg0: i32, %arg1: memref<2x16x160xbf16, #tpu.memory_space<vmem>>, %arg2: memref<3x160x128xbf16, #tpu.memory_space<vmem>>, %arg3: memref<1x128xf32, #tpu.memory_space<vmem>>, %arg4: memref<3x128x128xbf16, #tpu.memory_space<vmem>>, %arg5: memref<1x128xf32, #tpu.memory_space<vmem>>, %arg6: memref<32x128xf32, #tpu.memory_space<vmem>>) attributes {dimension_semantics = [#tpu.dimension_semantics<parallel>], iteration_bounds = array<i64: 2>, scalar_prefetch = 0 : i64, scratch_operands = 0 : i64, tpu.core_type = #tpu.core_type<tc>, window_params = [{transform_indices = @transform_0, window_bounds = array<i64: 2, 16, 160>}, {pipeline_mode = #tpu.pipeline_mode<synchronous>, transform_indices = @transform_1, window_bounds = array<i64: 3, 160, 128>}, {pipeline_mode = #tpu.pipeline_mode<synchronous>, transform_indices = @transform_2, window_bounds = array<i64: 1, 128>}, {pipeline_mode = #tpu.pipeline_mode<synchronous>, transform_indices = @transform_3, window_bounds = array<i64: 3, 128, 128>}, {pipeline_mode = #tpu.pipeline_mode<synchronous>, transform_indices = @transform_4, window_bounds = array<i64: 1, 128>}, {transform_indices = @transform_5, window_bounds = array<i64: 32, 128>}]} {
    %0 = tpu.iota {dimensions = array<i32: 0>} : vector<32x128xi32>
    %c16_i32 = arith.constant 16 : i32
    %c0_i32 = arith.constant 0 : i32
    %1 = arith.cmpi eq, %c16_i32, %c0_i32 : i32
    %c1_i32 = arith.constant 1 : i32
    %2 = arith.select %1, %c1_i32, %c16_i32 : i32
    %3 = vector.broadcast %2 : i32 to vector<32x128xi32>
    %4 = arith.remsi %0, %3 : vector<32x128xi32>
    %c0_i32_0 = arith.constant 0 : i32
    %5 = vector.broadcast %c0_i32_0 : i32 to vector<32x128xi32>
    %6 = arith.cmpi ne, %4, %5 : vector<32x128xi32>
    %c0_i32_1 = arith.constant 0 : i32
    %7 = vector.broadcast %c0_i32_1 : i32 to vector<32x128xi32>
    %8 = arith.cmpi slt, %4, %7 : vector<32x128xi32>
    %c0_i32_2 = arith.constant 0 : i32
    %9 = arith.cmpi slt, %2, %c0_i32_2 : i32
    %10 = vector.broadcast %9 : i1 to vector<32x128xi1>
    %11 = vector.broadcast %10 : vector<32x128xi1> to vector<32x128xi1>
    %12 = arith.xori %8, %11 : vector<32x128xi1>
    %13 = arith.andi %12, %6 : vector<32x128xi1>
    %14 = vector.broadcast %2 : i32 to vector<32x128xi32>
    %15 = arith.addi %4, %14 : vector<32x128xi32>
    %16 = arith.select %13, %15, %4 : vector<32x128xi1>, vector<32x128xi32>
    %c0 = arith.constant 0 : index
    %c0_3 = arith.constant 0 : index
    %c0_4 = arith.constant 0 : index
    %17 = vector.load %arg1[%c0, %c0_3, %c0_4] : memref<2x16x160xbf16, #tpu.memory_space<vmem>>, vector<2x16x160xbf16>
    %18 = vector.shape_cast %17 : vector<2x16x160xbf16> to vector<32x160xbf16>
    %c1 = arith.constant 1 : index
    %c0_5 = arith.constant 0 : index
    %c0_6 = arith.constant 0 : index
    %19 = vector.load %arg2[%c1, %c0_5, %c0_6] : memref<3x160x128xbf16, #tpu.memory_space<vmem>>, vector<1x160x128xbf16>
    %20 = vector.shape_cast %19 : vector<1x160x128xbf16> to vector<160x128xbf16>
    %cst = arith.constant dense<0.000000e+00> : vector<32x128xf32>
    %21 = tpu.matmul %18, %20, %cst {dimension_numbers = #tpu.dot_dimension_numbers<[1], [0], [0], [1], [0, 0, 1, 1], [], []>} : vector<32x160xbf16>, vector<160x128xbf16>, vector<32x128xf32> -> vector<32x128xf32>
    %c0_7 = arith.constant 0 : index
    %c0_8 = arith.constant 0 : index
    %c0_9 = arith.constant 0 : index
    %22 = vector.load %arg2[%c0_7, %c0_8, %c0_9] : memref<3x160x128xbf16, #tpu.memory_space<vmem>>, vector<1x160x128xbf16>
    %23 = vector.shape_cast %22 : vector<1x160x128xbf16> to vector<160x128xbf16>
    %cst_10 = arith.constant dense<0.000000e+00> : vector<32x128xf32>
    %24 = tpu.matmul %18, %23, %cst_10 {dimension_numbers = #tpu.dot_dimension_numbers<[1], [0], [0], [1], [0, 0, 1, 1], [], []>} : vector<32x160xbf16>, vector<160x128xbf16>, vector<32x128xf32> -> vector<32x128xf32>
    %cst_11 = arith.constant 0.000000e+00 : f32
    %25 = vector.broadcast %cst_11 : f32 to vector<1x128xf32>
    %26 = vector.extract_strided_slice %24 {offsets = [0, 0], sizes = [31, 128], strides = [1, 1]} : vector<32x128xf32> to vector<31x128xf32>
    %27 = tpu.concatenate %25, %26 in 0 : vector<1x128xf32>, vector<31x128xf32> -> vector<32x128xf32>
    %c-1_i32 = arith.constant -1 : i32
    %28 = vector.broadcast %c-1_i32 : i32 to vector<32x128xi32>
    %29 = arith.addi %16, %28 : vector<32x128xi32>
    %c0_i32_12 = arith.constant 0 : i32
    %30 = vector.broadcast %c0_i32_12 : i32 to vector<32x128xi32>
    %31 = arith.cmpi sge, %29, %30 : vector<32x128xi32>
    %c-1_i32_13 = arith.constant -1 : i32
    %32 = vector.broadcast %c-1_i32_13 : i32 to vector<32x128xi32>
    %33 = arith.addi %16, %32 : vector<32x128xi32>
    %c16_i32_14 = arith.constant 16 : i32
    %34 = vector.broadcast %c16_i32_14 : i32 to vector<32x128xi32>
    %35 = arith.cmpi slt, %33, %34 : vector<32x128xi32>
    %36 = arith.andi %31, %35 : vector<32x128xi1>
    %cst_15 = arith.constant 0.000000e+00 : f32
    %37 = vector.broadcast %cst_15 : f32 to vector<32x128xf32>
    %38 = arith.select %36, %27, %37 : vector<32x128xi1>, vector<32x128xf32>
    %39 = arith.addf %21, %38 : vector<32x128xf32>
    %c2 = arith.constant 2 : index
    %c0_16 = arith.constant 0 : index
    %c0_17 = arith.constant 0 : index
    %40 = vector.load %arg2[%c2, %c0_16, %c0_17] : memref<3x160x128xbf16, #tpu.memory_space<vmem>>, vector<1x160x128xbf16>
    %41 = vector.shape_cast %40 : vector<1x160x128xbf16> to vector<160x128xbf16>
    %cst_18 = arith.constant dense<0.000000e+00> : vector<32x128xf32>
    %42 = tpu.matmul %18, %41, %cst_18 {dimension_numbers = #tpu.dot_dimension_numbers<[1], [0], [0], [1], [0, 0, 1, 1], [], []>} : vector<32x160xbf16>, vector<160x128xbf16>, vector<32x128xf32> -> vector<32x128xf32>
    %cst_19 = arith.constant 0.000000e+00 : f32
    %43 = vector.broadcast %cst_19 : f32 to vector<1x128xf32>
    %44 = vector.extract_strided_slice %42 {offsets = [1, 0], sizes = [31, 128], strides = [1, 1]} : vector<32x128xf32> to vector<31x128xf32>
    %45 = tpu.concatenate %44, %43 in 0 : vector<31x128xf32>, vector<1x128xf32> -> vector<32x128xf32>
    %c1_i32_20 = arith.constant 1 : i32
    %46 = vector.broadcast %c1_i32_20 : i32 to vector<32x128xi32>
    %47 = arith.addi %16, %46 : vector<32x128xi32>
    %c0_i32_21 = arith.constant 0 : i32
    %48 = vector.broadcast %c0_i32_21 : i32 to vector<32x128xi32>
    %49 = arith.cmpi sge, %47, %48 : vector<32x128xi32>
    %c1_i32_22 = arith.constant 1 : i32
    %50 = vector.broadcast %c1_i32_22 : i32 to vector<32x128xi32>
    %51 = arith.addi %16, %50 : vector<32x128xi32>
    %c16_i32_23 = arith.constant 16 : i32
    %52 = vector.broadcast %c16_i32_23 : i32 to vector<32x128xi32>
    %53 = arith.cmpi slt, %51, %52 : vector<32x128xi32>
    %54 = arith.andi %49, %53 : vector<32x128xi1>
    %cst_24 = arith.constant 0.000000e+00 : f32
    %55 = vector.broadcast %cst_24 : f32 to vector<32x128xf32>
    %56 = arith.select %54, %45, %55 : vector<32x128xi1>, vector<32x128xf32>
    %57 = arith.addf %39, %56 : vector<32x128xf32>
    %c0_25 = arith.constant 0 : index
    %c0_26 = arith.constant 0 : index
    %58 = vector.load %arg3[%c0_25, %c0_26] : memref<1x128xf32, #tpu.memory_space<vmem>>, vector<1x128xf32>
    %59 = vector.broadcast %58 : vector<1x128xf32> to vector<32x128xf32>
    %60 = arith.addf %57, %59 : vector<32x128xf32>
    %cst_27 = arith.constant 0.000000e+00 : f32
    %61 = vector.broadcast %cst_27 : f32 to vector<32x128xf32>
    %62 = arith.maximumf %60, %61 : vector<32x128xf32>
    %63 = arith.truncf %62 : vector<32x128xf32> to vector<32x128xbf16>
    %c1_28 = arith.constant 1 : index
    %c0_29 = arith.constant 0 : index
    %c0_30 = arith.constant 0 : index
    %64 = vector.load %arg4[%c1_28, %c0_29, %c0_30] : memref<3x128x128xbf16, #tpu.memory_space<vmem>>, vector<1x128x128xbf16>
    %65 = vector.shape_cast %64 : vector<1x128x128xbf16> to vector<128x128xbf16>
    %cst_31 = arith.constant dense<0.000000e+00> : vector<32x128xf32>
    %66 = tpu.matmul %63, %65, %cst_31 {dimension_numbers = #tpu.dot_dimension_numbers<[1], [0], [0], [1], [0, 0, 1, 1], [], []>} : vector<32x128xbf16>, vector<128x128xbf16>, vector<32x128xf32> -> vector<32x128xf32>
    %c0_32 = arith.constant 0 : index
    %c0_33 = arith.constant 0 : index
    %c0_34 = arith.constant 0 : index
    %67 = vector.load %arg4[%c0_32, %c0_33, %c0_34] : memref<3x128x128xbf16, #tpu.memory_space<vmem>>, vector<1x128x128xbf16>
    %68 = vector.shape_cast %67 : vector<1x128x128xbf16> to vector<128x128xbf16>
    %cst_35 = arith.constant dense<0.000000e+00> : vector<32x128xf32>
    %69 = tpu.matmul %63, %68, %cst_35 {dimension_numbers = #tpu.dot_dimension_numbers<[1], [0], [0], [1], [0, 0, 1, 1], [], []>} : vector<32x128xbf16>, vector<128x128xbf16>, vector<32x128xf32> -> vector<32x128xf32>
    %cst_36 = arith.constant 0.000000e+00 : f32
    %70 = vector.broadcast %cst_36 : f32 to vector<1x128xf32>
    %71 = vector.extract_strided_slice %69 {offsets = [0, 0], sizes = [31, 128], strides = [1, 1]} : vector<32x128xf32> to vector<31x128xf32>
    %72 = tpu.concatenate %70, %71 in 0 : vector<1x128xf32>, vector<31x128xf32> -> vector<32x128xf32>
    %c-1_i32_37 = arith.constant -1 : i32
    %73 = vector.broadcast %c-1_i32_37 : i32 to vector<32x128xi32>
    %74 = arith.addi %16, %73 : vector<32x128xi32>
    %c0_i32_38 = arith.constant 0 : i32
    %75 = vector.broadcast %c0_i32_38 : i32 to vector<32x128xi32>
    %76 = arith.cmpi sge, %74, %75 : vector<32x128xi32>
    %c-1_i32_39 = arith.constant -1 : i32
    %77 = vector.broadcast %c-1_i32_39 : i32 to vector<32x128xi32>
    %78 = arith.addi %16, %77 : vector<32x128xi32>
    %c16_i32_40 = arith.constant 16 : i32
    %79 = vector.broadcast %c16_i32_40 : i32 to vector<32x128xi32>
    %80 = arith.cmpi slt, %78, %79 : vector<32x128xi32>
    %81 = arith.andi %76, %80 : vector<32x128xi1>
    %cst_41 = arith.constant 0.000000e+00 : f32
    %82 = vector.broadcast %cst_41 : f32 to vector<32x128xf32>
    %83 = arith.select %81, %72, %82 : vector<32x128xi1>, vector<32x128xf32>
    %84 = arith.addf %66, %83 : vector<32x128xf32>
    %c2_42 = arith.constant 2 : index
    %c0_43 = arith.constant 0 : index
    %c0_44 = arith.constant 0 : index
    %85 = vector.load %arg4[%c2_42, %c0_43, %c0_44] : memref<3x128x128xbf16, #tpu.memory_space<vmem>>, vector<1x128x128xbf16>
    %86 = vector.shape_cast %85 : vector<1x128x128xbf16> to vector<128x128xbf16>
    %cst_45 = arith.constant dense<0.000000e+00> : vector<32x128xf32>
    %87 = tpu.matmul %63, %86, %cst_45 {dimension_numbers = #tpu.dot_dimension_numbers<[1], [0], [0], [1], [0, 0, 1, 1], [], []>} : vector<32x128xbf16>, vector<128x128xbf16>, vector<32x128xf32> -> vector<32x128xf32>
    %cst_46 = arith.constant 0.000000e+00 : f32
    %88 = vector.broadcast %cst_46 : f32 to vector<1x128xf32>
    %89 = vector.extract_strided_slice %87 {offsets = [1, 0], sizes = [31, 128], strides = [1, 1]} : vector<32x128xf32> to vector<31x128xf32>
    %90 = tpu.concatenate %89, %88 in 0 : vector<31x128xf32>, vector<1x128xf32> -> vector<32x128xf32>
    %c1_i32_47 = arith.constant 1 : i32
    %91 = vector.broadcast %c1_i32_47 : i32 to vector<32x128xi32>
    %92 = arith.addi %16, %91 : vector<32x128xi32>
    %c0_i32_48 = arith.constant 0 : i32
    %93 = vector.broadcast %c0_i32_48 : i32 to vector<32x128xi32>
    %94 = arith.cmpi sge, %92, %93 : vector<32x128xi32>
    %c1_i32_49 = arith.constant 1 : i32
    %95 = vector.broadcast %c1_i32_49 : i32 to vector<32x128xi32>
    %96 = arith.addi %16, %95 : vector<32x128xi32>
    %c16_i32_50 = arith.constant 16 : i32
    %97 = vector.broadcast %c16_i32_50 : i32 to vector<32x128xi32>
    %98 = arith.cmpi slt, %96, %97 : vector<32x128xi32>
    %99 = arith.andi %94, %98 : vector<32x128xi1>
    %cst_51 = arith.constant 0.000000e+00 : f32
    %100 = vector.broadcast %cst_51 : f32 to vector<32x128xf32>
    %101 = arith.select %99, %90, %100 : vector<32x128xi1>, vector<32x128xf32>
    %102 = arith.addf %84, %101 : vector<32x128xf32>
    %c0_52 = arith.constant 0 : index
    %c0_53 = arith.constant 0 : index
    %103 = vector.load %arg5[%c0_52, %c0_53] : memref<1x128xf32, #tpu.memory_space<vmem>>, vector<1x128xf32>
    %104 = vector.broadcast %103 : vector<1x128xf32> to vector<32x128xf32>
    %105 = arith.addf %102, %104 : vector<32x128xf32>
    %106 = arith.addf %62, %105 : vector<32x128xf32>
    %cst_54 = arith.constant 0.000000e+00 : f32
    %107 = vector.broadcast %cst_54 : f32 to vector<32x128xf32>
    %108 = arith.maximumf %106, %107 : vector<32x128xf32>
    %c0_55 = arith.constant 0 : index
    %c0_56 = arith.constant 0 : index
    %109 = vector.load %arg6[%c0_55, %c0_56] : memref<32x128xf32, #tpu.memory_space<vmem>>, vector<32x128xf32>
    tpu.vector_store %arg6[%c0_55, %c0_56], %108 {strides = array<i32>} : memref<32x128xf32, #tpu.memory_space<vmem>>, vector<32x128xf32>,
    return
  }
  func.func @transform_0(%arg0: i32) -> (i32, i32, i32) {
    %c0_i32 = arith.constant 0 : i32
    %c0_i32_0 = arith.constant 0 : i32
    %c0_i32_1 = arith.constant 0 : i32
    return %arg0, %c0_i32, %c0_i32_0 : i32, i32, i32
  }
  func.func @transform_1(%arg0: i32) -> (i32, i32, i32) {
    %c0_i32 = arith.constant 0 : i32
    %c0_i32_0 = arith.constant 0 : i32
    %c0_i32_1 = arith.constant 0 : i32
    %c0_i32_2 = arith.constant 0 : i32
    return %c0_i32, %c0_i32_0, %c0_i32_1 : i32, i32, i32
  }
  func.func @transform_2(%arg0: i32) -> (i32, i32) {
    %c0_i32 = arith.constant 0 : i32
    %c0_i32_0 = arith.constant 0 : i32
    %c0_i32_1 = arith.constant 0 : i32
    return %c0_i32, %c0_i32_0 : i32, i32
  }
  func.func @transform_3(%arg0: i32) -> (i32, i32, i32) {
    %c0_i32 = arith.constant 0 : i32
    %c0_i32_0 = arith.constant 0 : i32
    %c0_i32_1 = arith.constant 0 : i32
    %c0_i32_2 = arith.constant 0 : i32
    return %c0_i32, %c0_i32_0, %c0_i32_1 : i32, i32, i32
  }
  func.func @transform_4(%arg0: i32) -> (i32, i32) {
    %c0_i32 = arith.constant 0 : i32
    %c0_i32_0 = arith.constant 0 : i32
    %c0_i32_1 = arith.constant 0 : i32
    return %c0_i32, %c0_i32_0 : i32, i32
  }
  func.func @transform_5(%arg0: i32) -> (i32, i32) {
    %c0_i32 = arith.constant 0 : i32
    %c0_i32_0 = arith.constant 0 : i32
    return %arg0, %c0_i32 : i32, i32
  }
}

</mosaic_0001>

<llo_original>
// kernel: tile.13
$region0: #{tile.13}
  #allocation0 [shape = 's32[1]{0}', space=sflag, size = 0x4, scoped, tag = 'scoped memory for tile.13']
  %s0 = inlined_call_operand.vmem [shape: f32[8], index: 0, kind: input, shape index: {}]
  %s1 = inlined_call_operand.vmem [shape: f32[16,8], index: 1, kind: output, shape index: {}]
  // Predicated region
  $region2: #{tile.13} parent=0 // pred_check
    _
  $region3: #{tile.13} parent=0 // pred_check_branch
    %3 = sbr.rel (0) target = $region5
  $region4: #{tile.13} parent=0 // pred_region
    _
  $region5: #{tile.13} parent=0 // pred_fallthru
    _
  %v4 = vld [vmem:[%s0] ss:$0 sm:$0xff]
  %5 = vst [vmem:[%s1] sm:$0xff] %v4
  %s6 = scalar_lea.vmem %s1, 8
  %7 = vst [vmem:[%s6] sm:$0xff] %v4

// kernel: tile.14
$region0: #{tile.14}
  %s0 = inlined_call_operand.vmem [shape: f32[16,8], index: 0, kind: input, shape index: {}]
  %s1 = inlined_call_operand.vmem [shape: f32[1,128], index: 1, kind: output, shape index: {}]
  $region1: #{tile.14} parent=0
    #allocation0 [shape = 'u8[4096]{0}', space=vmem, size = 0x1000, scoped, tag = 'scoped mem for output reshape']
    %v2 = vld [vmem:[%s0] sm:$0x1]
    %vm3 = vcmask 64512
    %4 = vst.msk [vmem:[#allocation0] sm:$0x1] %vm3, %v2
    %s5 = scalar_lea.vmem %s0, 15
    %v6 = vld [vmem:[%s5] sm:$0x1]
    %7 = vrot.lane.b32.xlu0 %v6, 120
    %v8 = vpop.permute.xlu0 %7
    %vm9 = vcmask 1048512
    %10 = vst.msk [vmem:[#allocation0] sm:$0x1] %vm9, %v8
    %s11 = scalar_lea.vmem %s0, 14
    %v12 = vld [vmem:[%s11] sm:$0x1]
    %13 = vrot.lane.b32.xlu0 %v12, 112
    %v14 = vpop.permute.xlu0 %13
    %vm15 = vcmask 982912
    %16 = vst.msk [vmem:[#allocation0] sm:$0x1] %vm15, %v14
    %s17 = scalar_lea.vmem %s0, 13
    %v18 = vld [vmem:[%s17] sm:$0x1]
    %19 = vrot.lane.b32.xlu0 %v18, 104
    %v20 = vpop.permute.xlu0 %19
    %vm21 = vcmask 917312
    %22 = vst.msk [vmem:[#allocation0] sm:$0x1] %vm21, %v20
    %s23 = scalar_lea.vmem %s0, 12
    %v24 = vld [vmem:[%s23] sm:$0x1]
    %25 = vrot.lane.b32.xlu0 %v24, 96
    %v26 = vpop.permute.xlu0 %25
    %vm27 = vcmask 851712
    %28 = vst.msk [vmem:[#allocation0] sm:$0x1] %vm27, %v26
    %s29 = scalar_lea.vmem %s0, 11
    %v30 = vld [vmem:[%s29] sm:$0x1]
    %31 = vrot.lane.b32.xlu0 %v30, 88
    %v32 = vpop.permute.xlu0 %31
    %vm33 = vcmask 786112
    %34 = vst.msk [vmem:[#allocation0] sm:$0x1] %vm33, %v32
    %s35 = scalar_lea.vmem %s0, 10
    %v36 = vld [vmem:[%s35] sm:$0x1]
    %37 = vrot.lane.b32.xlu0 %v36, 80
    %v38 = vpop.permute.xlu0 %37
    %vm39 = vcmask 720512
    %40 = vst.msk [vmem:[#allocation0] sm:$0x1] %vm39, %v38
    %s41 = scalar_lea.vmem %s0, 9
    %v42 = vld [vmem:[%s41] sm:$0x1]
    %43 = vrot.lane.b32.xlu0 %v42, 72
    %v44 = vpop.permute.xlu0 %43
    %vm45 = vcmask 654912
    %46 = vst.msk [vmem:[#allocation0] sm:$0x1] %vm45, %v44
    %s47 = scalar_lea.vmem %s0, 8
    %v48 = vld [vmem:[%s47] sm:$0x1]
    %49 = vrot.lane.b32.xlu0 %v48, 64
    %v50 = vpop.permute.xlu0 %49
    %vm51 = vcmask 589312
    %52 = vst.msk [vmem:[#allocation0] sm:$0x1] %vm51, %v50
    %s53 = scalar_lea.vmem %s0, 7
    %v54 = vld [vmem:[%s53] sm:$0x1]
    %55 = vrot.lane.b32.xlu0 %v54, 56
    %v56 = vpop.permute.xlu0 %55
    %vm57 = vcmask 523712
    %58 = vst.msk [vmem:[#allocation0] sm:$0x1] %vm57, %v56
    %s59 = scalar_lea.vmem %s0, 6
    %v60 = vld [vmem:[%s59] sm:$0x1]
    %61 = vrot.lane.b32.xlu0 %v60, 48
    %v62 = vpop.permute.xlu0 %61
    %vm63 = vcmask 458112
    %64 = vst.msk [vmem:[#allocation0] sm:$0x1] %vm63, %v62
    %s65 = scalar_lea.vmem %s0, 5
    %v66 = vld [vmem:[%s65] sm:$0x1]
    %67 = vrot.lane.b32.xlu0 %v66, 40
    %v68 = vpop.permute.xlu0 %67
    %vm69 = vcmask 392512
    %70 = vst.msk [vmem:[#allocation0] sm:$0x1] %vm69, %v68
    %s71 = scalar_lea.vmem %s0, 4
    %v72 = vld [vmem:[%s71] sm:$0x1]
    %73 = vrot.lane.b32.xlu0 %v72, 32
    %v74 = vpop.permute.xlu0 %73
    %vm75 = vcmask 326912
    %76 = vst.msk [vmem:[#allocation0] sm:$0x1] %vm75, %v74
    %s77 = scalar_lea.vmem %s0, 3
    %v78 = vld [vmem:[%s77] sm:$0x1]
    %79 = vrot.lane.b32.xlu0 %v78, 24
    %v80 = vpop.permute.xlu0 %79
    %vm81 = vcmask 261312
    %82 = vst.msk [vmem:[#allocation0] sm:$0x1] %vm81, %v80
    %s83 = scalar_lea.vmem %s0, 2
    %v84 = vld [vmem:[%s83] sm:$0x1]
    %85 = vrot.lane.b32.xlu0 %v84, 16
    %v86 = vpop.permute.xlu0 %85
    %vm87 = vcmask 195712
    %88 = vst.msk [vmem:[#allocation0] sm:$0x1] %vm87, %v86
    %s89 = scalar_lea.vmem %s0, 1
    %v90 = vld [vmem:[%s89] sm:$0x1]
    %91 = vrot.lane.b32.xlu0 %v90, 8
    %v92 = vpop.permute.xlu0 %91
    %vm93 = vcmask 130112
    %94 = vst.msk [vmem:[#allocation0] sm:$0x1] %vm93, %v92
    %s96 = sshll.u32 1, 1
    %s97 = ssub.s32 %s96, 1
    %v99 = vld [vmem:[#allocation0] sm:%s97]
    %s100 = sshll.u32 1, 1
    %s101 = ssub.s32 %s100, 1
    %102 = vst [vmem:[%s1] sm:%s101] %v99

// kernel: decblock_forward.1
$region0: #{decblock_forward.1}
  #allocation0 [shape = 'u32[]', space=smem, size = 0x4, offset = 0x4, fixed_abs, tag = 'smem constant byte address 0x4 - core index']
  #allocation1 [shape = 'u32[144,128]{1,0:T(1,128)}', space=vmem, size = 0x12000, scoped, tag = 'internal scratch']
  %s0 = inlined_call_operand.vmem [shape: bf16[4,16,160], index: 0, kind: input, shape index: {}]
  %s1 = inlined_call_operand.vmem [shape: bf16[3,160,128], index: 1, kind: input, shape index: {}]
  %s2 = inlined_call_operand.vmem [shape: f32[1,128], index: 2, kind: input, shape index: {}]
  %s3 = inlined_call_operand.vmem [shape: bf16[3,128,128], index: 3, kind: input, shape index: {}]
  %s4 = inlined_call_operand.vmem [shape: f32[1,128], index: 4, kind: input, shape index: {}]
  %s5 = inlined_call_operand.vmem [shape: f32[64,128], index: 5, kind: output, shape index: {}]
  %s6 = sld [smem:[#allocation0]]
  $region53: #{decblock_forward.1} parent=0
    _
  %s8 = ssub.s32 1, %s6
  %s9 = scalar_select 0, %s8, %s6
  loop: start=0, step=1, limit=4
  $region2: #{decblock_forward.1} parent=0 // loop_pre_header
    _
  $region3: #{decblock_forward.1} parent=0 // loop_header
    %s11 = sphi 0, %s15
    %p12 = scmp.ge.s32.totalorder %s11, 4
    %s21 = sphi 0, %s23
    %s24 = sphi 0, %s21
    %s25 = sphi 0, %s24
    %s41 = sphi 0, %s25
    %s45 = sphi 0, %s45
    %s47 = sphi 0, %s45
    %s48 = sphi 0, %s47
    %s62 = sphi 0, %s48
    %s66 = sphi 0, %s66
    %s68 = sphi 0, %s66
    %s69 = sphi 0, %s68
    %s83 = sphi 0, %s69
    %s87 = sphi 0, %s87
    %s89 = sphi 0, %s87
    %s90 = sphi 0, %s89
    %s104 = sphi 0, %s90
    %s108 = sphi 0, %s108
    %s110 = sphi 0, %s108
    %s111 = sphi 0, %s110
    %s125 = sphi 0, %s111
    %s131 = sphi 0, %s133
    %s134 = sphi 0, %s131
    %s135 = sphi 0, %s134
    %s151 = sphi 0, %s135
  $region4: #{decblock_forward.1} parent=0 // loop_header_branch
    %14 = sbr.rel (%p12) target = $region8
  $region5: #{decblock_forward.1} parent=0 // loop_body
    %s16 = ssub.s32 %s11, 1
    %s17 = ssub.s32 %s11, 2
    %s18 = sadd.s32 %s11, 1
    %s19 = ssub.s32 %s11, %s18
    %p20 = scmp.eq.s32.totalorder %s19, 0
    %s22 = sadd.s32 %s21, 1
    %s23 = scalar_select %p20, %s21, %s22
    %p26 = pneg %p20
    %p27 = scmp.eq.s32.totalorder %s11, 1
    %p28 = por %p26, %p27
    %p29 = scmp.ne.s32.totalorder %s21, %s24
    %p30 = scmp.eq.s32.totalorder %s11, 0
    %p31 = por %p29, %p30
    %p32 = scmp.ne.s32.totalorder %s21, %s24
    %p33 = scmp.eq.s32.totalorder %s16, 1
    %p34 = por %p32, %p33
    %p35 = scmp.ne.s32.totalorder %s24, %s25
    %p36 = scmp.eq.s32.totalorder %s16, 0
    %p37 = por %p35, %p36
    %p38 = scmp.ne.s32.totalorder %s24, %s25
    %p39 = scmp.eq.s32.totalorder %s17, 1
    %p40 = por %p38, %p39
    %p42 = scmp.ne.s32.totalorder %s25, %s41
    %p43 = scmp.eq.s32.totalorder %s17, 0
    %p44 = por %p42, %p43
    %s46 = sadd.s32 %s45, 1
    %p49 = scmp.eq.s32.totalorder %s11, 1
    %p50 = scmp.ne.s32.totalorder %s45, %s47
    %p51 = scmp.eq.s32.totalorder %s11, 0
    %p52 = por %p50, %p51
    %p53 = scmp.ne.s32.totalorder %s45, %s47
    %p54 = scmp.eq.s32.totalorder %s16, 1
    %p55 = por %p53, %p54
    %p56 = scmp.ne.s32.totalorder %s47, %s48
    %p57 = scmp.eq.s32.totalorder %s16, 0
    %p58 = por %p56, %p57
    %p59 = scmp.ne.s32.totalorder %s47, %s48
    %p60 = scmp.eq.s32.totalorder %s17, 1
    %p61 = por %p59, %p60
    %p63 = scmp.ne.s32.totalorder %s48, %s62
    %p64 = scmp.eq.s32.totalorder %s17, 0
    %p65 = por %p63, %p64
    %s67 = sadd.s32 %s66, 1
    %p70 = scmp.eq.s32.totalorder %s11, 1
    %p71 = scmp.ne.s32.totalorder %s66, %s68
    %p72 = scmp.eq.s32.totalorder %s11, 0
    %p73 = por %p71, %p72
    %p74 = scmp.ne.s32.totalorder %s66, %s68
    %p75 = scmp.eq.s32.totalorder %s16, 1
    %p76 = por %p74, %p75
    %p77 = scmp.ne.s32.totalorder %s68, %s69
    %p78 = scmp.eq.s32.totalorder %s16, 0
    %p79 = por %p77, %p78
    %p80 = scmp.ne.s32.totalorder %s68, %s69
    %p81 = scmp.eq.s32.totalorder %s17, 1
    %p82 = por %p80, %p81
    %p84 = scmp.ne.s32.totalorder %s69, %s83
    %p85 = scmp.eq.s32.totalorder %s17, 0
    %p86 = por %p84, %p85
    %s88 = sadd.s32 %s87, 1
    %p91 = scmp.eq.s32.totalorder %s11, 1
    %p92 = scmp.ne.s32.totalorder %s87, %s89
    %p93 = scmp.eq.s32.totalorder %s11, 0
    %p94 = por %p92, %p93
    %p95 = scmp.ne.s32.totalorder %s87, %s89
    %p96 = scmp.eq.s32.totalorder %s16, 1
    %p97 = por %p95, %p96
    %p98 = scmp.ne.s32.totalorder %s89, %s90
    %p99 = scmp.eq.s32.totalorder %s16, 0
    %p100 = por %p98, %p99
    %p101 = scmp.ne.s32.totalorder %s89, %s90
    %p102 = scmp.eq.s32.totalorder %s17, 1
    %p103 = por %p101, %p102
    %p105 = scmp.ne.s32.totalorder %s90, %s104
    %p106 = scmp.eq.s32.totalorder %s17, 0
    %p107 = por %p105, %p106
    %s109 = sadd.s32 %s108, 1
    %p112 = scmp.eq.s32.totalorder %s11, 1
    %p113 = scmp.ne.s32.totalorder %s108, %s110
    %p114 = scmp.eq.s32.totalorder %s11, 0
    %p115 = por %p113, %p114
    %p116 = scmp.ne.s32.totalorder %s108, %s110
    %p117 = scmp.eq.s32.totalorder %s16, 1
    %p118 = por %p116, %p117
    %p119 = scmp.ne.s32.totalorder %s110, %s111
    %p120 = scmp.eq.s32.totalorder %s16, 0
    %p121 = por %p119, %p120
    %p122 = scmp.ne.s32.totalorder %s110, %s111
    %p123 = scmp.eq.s32.totalorder %s17, 1
    %p124 = por %p122, %p123
    %p126 = scmp.ne.s32.totalorder %s111, %s125
    %p127 = scmp.eq.s32.totalorder %s17, 0
    %p128 = por %p126, %p127
    %s129 = ssub.s32 %s11, %s18
    %p130 = scmp.eq.s32.totalorder %s129, 0
    %s132 = sadd.s32 %s131, 1
    %s133 = scalar_select %p130, %s131, %s132
    %p136 = pneg %p130
    %p137 = scmp.eq.s32.totalorder %s11, 1
    %p138 = por %p136, %p137
    %p139 = scmp.ne.s32.totalorder %s131, %s134
    %p140 = scmp.eq.s32.totalorder %s11, 0
    %p141 = por %p139, %p140
    %p142 = scmp.ne.s32.totalorder %s131, %s134
    %p143 = scmp.eq.s32.totalorder %s16, 1
    %p144 = por %p142, %p143
    %p145 = scmp.ne.s32.totalorder %s134, %s135
    %p146 = scmp.eq.s32.totalorder %s16, 0
    %p147 = por %p145, %p146
    %p148 = scmp.ne.s32.totalorder %s134, %s135
    %p149 = scmp.eq.s32.totalorder %s17, 1
    %p150 = por %p148, %p149
    %p152 = scmp.ne.s32.totalorder %s135, %s151
    %p153 = scmp.eq.s32.totalorder %s17, 0
    %p154 = por %p152, %p153
    %p155 = scmp.le.s32.totalorder 1, %s11
    %p156 = scmp.lt.s32.totalorder %s11, 3
    %p157 = pnand %p155, %p156
    %p158 = pneg %p157
    // Predicated region
    $region9: #{decblock_forward.1} parent=5 // pred_check
      _
    $region10: #{decblock_forward.1} parent=5 // pred_check_branch
      %160 = sbr.rel (%p157) target = $region12
    $region11: #{decblock_forward.1} parent=5 // pred_region
      %s161 = ssub.s32 %s11, 1
      // Predicated region
      $region13: #{decblock_forward.1} parent=11 // pred_check
        %p162 = pneg %p58
      $region14: #{decblock_forward.1} parent=11 // pred_check_branch
        %164 = sbr.rel (%p162) target = $region16
      $region15: #{decblock_forward.1} parent=11 // pred_region
        _
      $region16: #{decblock_forward.1} parent=11 // pred_fallthru
        _
      // Predicated region
      $region17: #{decblock_forward.1} parent=11 // pred_check
        %p165 = pneg %p79
      $region18: #{decblock_forward.1} parent=11 // pred_check_branch
        %167 = sbr.rel (%p165) target = $region20
      $region19: #{decblock_forward.1} parent=11 // pred_region
        _
      $region20: #{decblock_forward.1} parent=11 // pred_fallthru
        _
      // Predicated region
      $region21: #{decblock_forward.1} parent=11 // pred_check
        %p168 = pneg %p100
      $region22: #{decblock_forward.1} parent=11 // pred_check_branch
        %170 = sbr.rel (%p168) target = $region24
      $region23: #{decblock_forward.1} parent=11 // pred_region
        _
      $region24: #{decblock_forward.1} parent=11 // pred_fallthru
        _
      // Predicated region
      $region25: #{decblock_forward.1} parent=11 // pred_check
        %p171 = pneg %p121
      $region26: #{decblock_forward.1} parent=11 // pred_check_branch
        %173 = sbr.rel (%p171) target = $region28
      $region27: #{decblock_forward.1} parent=11 // pred_region
        _
      $region28: #{decblock_forward.1} parent=11 // pred_fallthru
        _
    $region12: #{decblock_forward.1} parent=5 // pred_fallthru
      _
    %p174 = scmp.lt.s32.totalorder %s11, 2
    // Predicated region
    $region29: #{decblock_forward.1} parent=5 // pred_check
      %p175 = pneg %p174
    $region30: #{decblock_forward.1} parent=5 // pred_check_branch
      %177 = sbr.rel (%p175) target = $region32
    $region31: #{decblock_forward.1} parent=5 // pred_region
      // Predicated region
      $region33: #{decblock_forward.1} parent=31 // pred_check
        %p178 = pneg %p31
      $region34: #{decblock_forward.1} parent=31 // pred_check_branch
        %180 = sbr.rel (%p178) target = $region36
      $region35: #{decblock_forward.1} parent=31 // pred_region
        %s181 = smul.u32 2, %s11
        %p182 = scmp.lt.s32.totalorder %s181, 3
        %s183 = scalar_select %p182, %s181, 3
        %s184 = smul.addr %s183, 4
        %s185 = smul.addr %s184, 4
        %s186 = scalar_lea.vmem %s0, %s185
        %s187 = smul.u32 2, %s11
      $region36: #{decblock_forward.1} parent=31 // pred_fallthru
        _
    $region32: #{decblock_forward.1} parent=5 // pred_fallthru
      _
    %p188 = scmp.le.s32.totalorder 1, %s11
    %p189 = scmp.lt.s32.totalorder %s11, 3
    %p190 = pnand %p188, %p189
    %p191 = pneg %p190
    // Predicated region
    $region37: #{decblock_forward.1} parent=5 // pred_check
      _
    $region38: #{decblock_forward.1} parent=5 // pred_check_branch
      %193 = sbr.rel (%p190) target = $region40
    $region39: #{decblock_forward.1} parent=5 // pred_region
      %s194 = ssub.s32 %s11, 1
      %s195 = smul.u32 2, %s16
      %p196 = scmp.lt.s32.totalorder %s195, 3
      %s197 = scalar_select %p196, %s195, 3
      %s198 = smul.addr %s197, 4
      %s199 = smul.addr %s198, 4
      %s200 = scalar_lea.vmem %s0, %s199
      %p201 = pneg %p37
      %p202 = pneg %p34
      %p203 = pneg %p58
      %p204 = pneg %p55
      %p205 = pneg %p79
      %p206 = pneg %p76
      %p207 = pneg %p100
      %p208 = pneg %p97
      %p209 = pneg %p121
      %p210 = pneg %p118
      %p211 = pneg %p147
      %p212 = pneg %p144
      %s213 = smul.u32 4, %s16
      %p214 = scmp.lt.s32.totalorder %s213, 7
      %s215 = scalar_select %p214, %s213, 7
      %s216 = smul.addr %s215, 8
      %s217 = scalar_lea.vmem %s5, %s216
      %s218 = smul.u32 2, %s16
      %p219 = scmp.lt.s32.totalorder %s218, 3
      %s220 = scalar_select %p219, %s218, 3
      %s221 = smul.addr %s220, 4
      %s222 = smul.addr %s221, 4
      %s223 = scalar_lea.vmem %s0, %s222
      %s224 = smul.u32 2, %s16
      %s225 = smul.u32 4, %s16
      %p226 = scmp.lt.s32.totalorder %s225, 7
      %s227 = scalar_select %p226, %s225, 7
      %s228 = smul.addr %s227, 8
      %s229 = scalar_lea.vmem %s5, %s228
      %s230 = smul.u32 4, %s16
      %v232 = vlaneseq
      %v233 = vshrl.u32 %v232, 7
      %v234 = vadd.s32 %v233, 8
      %v235 = vadd.s32 %v233, 16
      %v236 = vadd.s32 %v233, 24
      %vm237 = vcmp.lt.s32.totalorder %v233, 0
      %v238 = vsub.s32 0, %v233
      %v239 = vsel %vm237, %v238, %v233
      %v240 = vshrl.u32 %v239, 4
      %v241 = vand.u32 %v239, 15
      %v242 = vsub.s32 0, %v241
      %v243 = vsel %vm237, %v242, %v241
      %vm244 = vcmp.lt.s32.totalorder %v234, 0
      %v245 = vsub.s32 0, %v234
      %v246 = vsel %vm244, %v245, %v234
      %v247 = vshrl.u32 %v246, 4
      %v248 = vand.u32 %v246, 15
      %v249 = vsub.s32 0, %v248
      %v250 = vsel %vm244, %v249, %v248
      %vm251 = vcmp.lt.s32.totalorder %v235, 0
      %v252 = vsub.s32 0, %v235
      %v253 = vsel %vm251, %v252, %v235
      %v254 = vshrl.u32 %v253, 4
      %v255 = vand.u32 %v253, 15
      %v256 = vsub.s32 0, %v255
      %v257 = vsel %vm251, %v256, %v255
      %vm258 = vcmp.lt.s32.totalorder %v236, 0
      %v259 = vsub.s32 0, %v236
      %v260 = vsel %vm258, %v259, %v236
      %v261 = vshrl.u32 %v260, 4
      %v262 = vand.u32 %v260, 15
      %v263 = vsub.s32 0, %v262
      %v264 = vsel %vm258, %v263, %v262
      %vm265 = vcmp.ne.s32.totalorder %v243, 0
      %vm266 = vcmp.ne.s32.totalorder %v250, 0
      %vm267 = vcmp.ne.s32.totalorder %v257, 0
      %vm268 = vcmp.ne.s32.totalorder %v264, 0
      %vm269 = vcmp.lt.s32.totalorder %v243, 0
      %vm270 = vcmp.lt.s32.totalorder %v250, 0
      %vm271 = vcmp.lt.s32.totalorder %v257, 0
      %vm272 = vcmp.lt.s32.totalorder %v264, 0
      %vm273 = vmand %vm269, %vm265
      %vm274 = vmand %vm270, %vm266
      %vm275 = vmand %vm271, %vm267
      %vm276 = vmand %vm272, %vm268
      %v277 = vadd.s32 %v243, 16
      %v278 = vadd.s32 %v250, 16
      %v279 = vadd.s32 %v257, 16
      %v280 = vadd.s32 %v264, 16
      %v281 = vsel %vm273, %v277, %v243
      %v282 = vsel %vm274, %v278, %v250
      %v283 = vsel %vm275, %v279, %v257
      %v284 = vsel %vm276, %v280, %v264
      %v285 = vld [vmem:[%s223] sm:$0xff]
      %v286 = vld [vmem:[%s223 + $0x8] sm:$0xff]
      %v287 = vld [vmem:[%s223 + $0x10] sm:$0xff]
      %v288 = vld [vmem:[%s223 + $0x18] sm:$0xff]
      %s289 = scalar_lea.vmem %s1, 80
      %v290 = vld [vmem:[%s289] sm:$0xf]
      %v291 = vld [vmem:[%s289 + $0x4] sm:$0xf]
      %v292 = vld [vmem:[%s289 + $0x8] sm:$0xf]
      %v293 = vld [vmem:[%s289 + $0xc] sm:$0xf]
      %v294 = vld [vmem:[%s289 + $0x10] sm:$0xf]
      %v295 = vld [vmem:[%s289 + $0x14] sm:$0xf]
      %v296 = vld [vmem:[%s289 + $0x18] sm:$0xf]
      %v297 = vld [vmem:[%s289 + $0x1c] sm:$0xf]
      %v298 = vld [vmem:[%s289 + $0x20] sm:$0xf]
      %v299 = vld [vmem:[%s289 + $0x24] sm:$0xf]
      %v300 = vld [vmem:[%s289 + $0x28] sm:$0xf]
      %v301 = vld [vmem:[%s289 + $0x2c] sm:$0xf]
      %v302 = vld [vmem:[%s289 + $0x30] sm:$0xf]
      %v303 = vld [vmem:[%s289 + $0x34] sm:$0xf]
      %v304 = vld [vmem:[%s289 + $0x38] sm:$0xf]
      %v305 = vld [vmem:[%s289 + $0x3c] sm:$0xf]
      %v306 = vld [vmem:[%s289 + $0x40] sm:$0xf]
      %v307 = vld [vmem:[%s289 + $0x44] sm:$0xf]
      %v308 = vld [vmem:[%s289 + $0x48] sm:$0xf]
      %v309 = vld [vmem:[%s289 + $0x4c] sm:$0xf]
      %v310 = vld [vmem:[%s1] sm:$0xf]
      %v311 = vld [vmem:[%s1 + $0x4] sm:$0xf]
      %v312 = vld [vmem:[%s1 + $0x8] sm:$0xf]
      %v313 = vld [vmem:[%s1 + $0xc] sm:$0xf]
      %v314 = vld [vmem:[%s1 + $0x10] sm:$0xf]
      %v315 = vld [vmem:[%s1 + $0x14] sm:$0xf]
      %v316 = vld [vmem:[%s1 + $0x18] sm:$0xf]
      %v317 = vld [vmem:[%s1 + $0x1c] sm:$0xf]
      %v318 = vld [vmem:[%s1 + $0x20] sm:$0xf]
      %v319 = vld [vmem:[%s1 + $0x24] sm:$0xf]
      %v320 = vld [vmem:[%s1 + $0x28] sm:$0xf]
      %v321 = vld [vmem:[%s1 + $0x2c] sm:$0xf]
      %v322 = vld [vmem:[%s1 + $0x30] sm:$0xf]
      %v323 = vld [vmem:[%s1 + $0x34] sm:$0xf]
      %v324 = vld [vmem:[%s1 + $0x38] sm:$0xf]
      %v325 = vld [vmem:[%s1 + $0x3c] sm:$0xf]
      %v326 = vld [vmem:[%s1 + $0x40] sm:$0xf]
      %v327 = vld [vmem:[%s1 + $0x44] sm:$0xf]
      %v328 = vld [vmem:[%s1 + $0x48] sm:$0xf]
      %v329 = vld [vmem:[%s1 + $0x4c] sm:$0xf]
      %v334 = vunpack.c.l.b16 %v285
      %v335 = vunpack.c.h.b16 %v285
      %v336 = vunpack.c.l.b16 %v286
      %v337 = vunpack.c.h.b16 %v286
      %v338 = vunpack.c.l.b16 %v287
      %v339 = vunpack.c.h.b16 %v287
      %v340 = vunpack.c.l.b16 %v288
      %v341 = vunpack.c.h.b16 %v288
      %v342 = vpack.c.b16 %v336, %v334
      %v343 = vpack.c.b16 %v337, %v335
      %v344 = vpack.c.b16 %v340, %v338
      %v345 = vpack.c.b16 %v341, %v339
      %v368 = vunpack.c.l.b16 %v310
      %v369 = vunpack.c.l.b16 %v311
      %v370 = vunpack.c.l.b16 %v312
      %v371 = vunpack.c.l.b16 %v313
      %v372 = vunpack.c.l.b16 %v314
      %v373 = vunpack.c.l.b16 %v315
      %v374 = vunpack.c.l.b16 %v316
      %v375 = vunpack.c.l.b16 %v317
      %v376 = vunpack.c.l.b16 %v318
      %v377 = vunpack.c.l.b16 %v319
      %v378 = vunpack.c.l.b16 %v320
      %v379 = vunpack.c.l.b16 %v321
      %v380 = vunpack.c.l.b16 %v322
      %v381 = vunpack.c.l.b16 %v323
      %v382 = vunpack.c.l.b16 %v324
      %v383 = vunpack.c.l.b16 %v325
      %v384 = vunpack.c.l.b16 %v326
      %v385 = vunpack.c.l.b16 %v327
      %v386 = vunpack.c.l.b16 %v328
      %v387 = vunpack.c.l.b16 %v329
      %v388 = vpack.c.b16 %v369, %v368
      %v389 = vpack.c.b16 %v371, %v370
      %v390 = vpack.c.b16 %v373, %v372
      %v391 = vpack.c.b16 %v375, %v374
      %v392 = vpack.c.b16 %v377, %v376
      %v393 = vpack.c.b16 %v379, %v378
      %v394 = vpack.c.b16 %v381, %v380
      %v395 = vpack.c.b16 %v383, %v382
      %v396 = vpack.c.b16 %v385, %v384
      %v397 = vpack.c.b16 %v387, %v386
      %vm408 = vcmask 261120
      %v410 = vsel %vm408, %v343, 0
      %v413 = vsel %vm408, %v345, 0
      %415 = vmatprep.subr.bf16.mxu0 0
      %416 = vmatpush1.bf16.msra.mxu0 %v395
      %417 = vmatprep.subr.bf16.mxu0 0
      %418 = vmatpush1.bf16.msra.mxu0 %v394
      %419 = vmatprep.subr.bf16.mxu0 0
      %420 = vmatpush1.bf16.msra.mxu0 %v393
      %421 = vmatprep.subr.bf16.mxu0 0
      %422 = vmatpush1.bf16.msra.mxu0 %v392
      %423 = vmatprep.subr.bf16.mxu0 0
      %424 = vmatpush1.bf16.msra.mxu0 %v391
      %425 = vmatprep.subr.bf16.mxu0 0
      %426 = vmatpush1.bf16.msra.mxu0 %v390
      %427 = vmatprep.subr.bf16.mxu0 0
      %428 = vmatpush1.bf16.msra.mxu0 %v389
      %429 = vmatprep.subr.bf16.mxu0 0
      %430 = vmatpush1.bf16.msra.mxu0 %v388
      %431 = vmatprep.subr.bf16.mxu0 0
      %432 = vmatpush2.bf16.msra.mxu0 0
      %433 = vmatprep.subr.bf16.mxu0 0
      %434 = vmatpush2.bf16.msra.mxu0 0
      %435 = vmatprep.subr.bf16.mxu0 0
      %436 = vmatpush2.bf16.msra.mxu0 0
      %437 = vmatprep.subr.bf16.mxu0 0
      %438 = vmatpush2.bf16.msra.mxu0 0
      %439 = vmatprep.subr.bf16.mxu0 0
      %440 = vmatpush2.bf16.msra.mxu0 0
      %441 = vmatprep.subr.bf16.mxu0 0
      %442 = vmatpush2.bf16.msra.mxu0 0
      %443 = vmatprep.subr.bf16.mxu0 0
      %444 = vmatpush2.bf16.msra.mxu0 %v397
      %445 = vmatprep.subr.bf16.mxu0 0
      %446 = vmatpush2.bf16.msra.mxu0 %v396
      %447 = vmatprep.mubr.bf16.mxu0 %v410
      %448 = vmatmul.mubr.bf16.gmra.mxu0 %v342
      %v449 = vpop.f32.mrf.mxu0
      %v450 = vadd.f32 0.0, %v449
      %v451 = vpop.f32.mrf.mxu0
      %v452 = vpop.f32.mrf.mxu0
      %v453 = vadd.f32 0.0, %v452
      %v454 = vpop.f32.mrf.mxu0
      %455 = vmatprep.mubr.bf16.mxu0 %v413
      %456 = vmatmul.mubr.bf16.gmra.mxu0 %v344
      %v457 = vpop.f32.mrf.mxu0
      %v458 = vadd.f32 0.0, %v457
      %v459 = vpop.f32.mrf.mxu0
      %v460 = vpop.f32.mrf.mxu0
      %v461 = vadd.f32 0.0, %v460
      %v462 = vpop.f32.mrf.mxu0
      %463 = vdwg.mxu0
      %vm468 = vcmask 1040384
      %v469 = vrot.slane %v450, 7
      %v470 = vrot.slane %v453, 7
      %v471 = vsel %vm468, %v469, %v470
      %v472 = vrot.slane %v458, 7
      %v473 = vsel %vm468, %v470, %v472
      %v474 = vrot.slane %v461, 7
      %v475 = vsel %vm468, %v472, %v474
      %v480 = vsel %vm468, 0.0, %v469
      %v481 = vadd.s32 %v281, 4294967295
      %v482 = vadd.s32 %v282, 4294967295
      %v483 = vadd.s32 %v283, 4294967295
      %v484 = vadd.s32 %v284, 4294967295
      %vm485 = vcmp.ge.s32.totalorder %v481, 0
      %vm486 = vcmp.ge.s32.totalorder %v482, 0
      %vm487 = vcmp.ge.s32.totalorder %v483, 0
      %vm488 = vcmp.ge.s32.totalorder %v484, 0
      %vm489 = vcmp.lt.s32.totalorder %v481, 16
      %vm490 = vcmp.lt.s32.totalorder %v482, 16
      %vm491 = vcmp.lt.s32.totalorder %v483, 16
      %vm492 = vcmp.lt.s32.totalorder %v484, 16
      %vm493 = vmand %vm485, %vm489
      %vm494 = vmand %vm486, %vm490
      %vm495 = vmand %vm487, %vm491
      %vm496 = vmand %vm488, %vm492
      %v497 = vsel %vm493, %v480, 0.0
      %v498 = vsel %vm494, %v471, 0.0
      %v499 = vsel %vm495, %v473, 0.0
      %v500 = vsel %vm496, %v475, 0.0
      %v521 = vunpack.c.l.b16 %v290
      %v522 = vunpack.c.l.b16 %v291
      %v523 = vunpack.c.l.b16 %v292
      %v524 = vunpack.c.l.b16 %v293
      %v525 = vunpack.c.l.b16 %v294
      %v526 = vunpack.c.l.b16 %v295
      %v527 = vunpack.c.l.b16 %v296
      %v528 = vunpack.c.l.b16 %v297
      %v529 = vunpack.c.l.b16 %v298
      %v530 = vunpack.c.l.b16 %v299
      %v531 = vunpack.c.l.b16 %v300
      %v532 = vunpack.c.l.b16 %v301
      %v533 = vunpack.c.l.b16 %v302
      %v534 = vunpack.c.l.b16 %v303
      %v535 = vunpack.c.l.b16 %v304
      %v536 = vunpack.c.l.b16 %v305
      %v537 = vunpack.c.l.b16 %v306
      %v538 = vunpack.c.l.b16 %v307
      %v539 = vunpack.c.l.b16 %v308
      %v540 = vunpack.c.l.b16 %v309
      %v541 = vpack.c.b16 %v522, %v521
      %v542 = vpack.c.b16 %v524, %v523
      %v543 = vpack.c.b16 %v526, %v525
      %v544 = vpack.c.b16 %v528, %v527
      %v545 = vpack.c.b16 %v530, %v529
      %v546 = vpack.c.b16 %v532, %v531
      %v547 = vpack.c.b16 %v534, %v533
      %v548 = vpack.c.b16 %v536, %v535
      %v549 = vpack.c.b16 %v538, %v537
      %v550 = vpack.c.b16 %v540, %v539
      %561 = vmatprep.subr.bf16.mxu0 0
      %562 = vmatpush1.bf16.msra.mxu0 %v548
      %563 = vmatprep.subr.bf16.mxu0 0
      %564 = vmatpush1.bf16.msra.mxu0 %v547
      %565 = vmatprep.subr.bf16.mxu0 0
      %566 = vmatpush1.bf16.msra.mxu0 %v546
      %567 = vmatprep.subr.bf16.mxu0 0
      %568 = vmatpush1.bf16.msra.mxu0 %v545
      %569 = vmatprep.subr.bf16.mxu0 0
      %570 = vmatpush1.bf16.msra.mxu0 %v544
      %571 = vmatprep.subr.bf16.mxu0 0
      %572 = vmatpush1.bf16.msra.mxu0 %v543
      %573 = vmatprep.subr.bf16.mxu0 0
      %574 = vmatpush1.bf16.msra.mxu0 %v542
      %575 = vmatprep.subr.bf16.mxu0 0
      %576 = vmatpush1.bf16.msra.mxu0 %v541
      %577 = vmatprep.subr.bf16.mxu0 0
      %578 = vmatpush2.bf16.msra.mxu0 0
      %579 = vmatprep.subr.bf16.mxu0 0
      %580 = vmatpush2.bf16.msra.mxu0 0
      %581 = vmatprep.subr.bf16.mxu0 0
      %582 = vmatpush2.bf16.msra.mxu0 0
      %583 = vmatprep.subr.bf16.mxu0 0
      %584 = vmatpush2.bf16.msra.mxu0 0
      %585 = vmatprep.subr.bf16.mxu0 0
      %586 = vmatpush2.bf16.msra.mxu0 0
      %587 = vmatprep.subr.bf16.mxu0 0
      %588 = vmatpush2.bf16.msra.mxu0 0
      %589 = vmatprep.subr.bf16.mxu0 0
      %590 = vmatpush2.bf16.msra.mxu0 %v550
      %591 = vmatprep.subr.bf16.mxu0 0
      %592 = vmatpush2.bf16.msra.mxu0 %v549
      %593 = vmatprep.mubr.bf16.mxu0 %v410
      %594 = vmatmul.mubr.bf16.gmra.mxu0 %v342
      %v595 = vpop.f32.mrf.mxu0
      %v596 = vadd.f32 %v497, %v595
      %v597 = vpop.f32.mrf.mxu0
      %v598 = vpop.f32.mrf.mxu0
      %v599 = vadd.f32 %v498, %v598
      %v600 = vpop.f32.mrf.mxu0
      %601 = vmatprep.mubr.bf16.mxu0 %v413
      %602 = vmatmul.mubr.bf16.gmra.mxu0 %v344
      %v603 = vpop.f32.mrf.mxu0
      %v604 = vadd.f32 %v499, %v603
      %v605 = vpop.f32.mrf.mxu0
      %v606 = vpop.f32.mrf.mxu0
      %v607 = vadd.f32 %v500, %v606
      %v608 = vpop.f32.mrf.mxu0
      %609 = vdwg.mxu0
      %s610 = scalar_lea.vmem %s1, 160
      %v611 = vld [vmem:[%s610] sm:$0xf]
      %v612 = vld [vmem:[%s610 + $0x4] sm:$0xf]
      %v613 = vld [vmem:[%s610 + $0x8] sm:$0xf]
      %v614 = vld [vmem:[%s610 + $0xc] sm:$0xf]
      %v615 = vld [vmem:[%s610 + $0x10] sm:$0xf]
      %v616 = vld [vmem:[%s610 + $0x14] sm:$0xf]
      %v617 = vld [vmem:[%s610 + $0x18] sm:$0xf]
      %v618 = vld [vmem:[%s610 + $0x1c] sm:$0xf]
      %v619 = vld [vmem:[%s610 + $0x20] sm:$0xf]
      %v620 = vld [vmem:[%s610 + $0x24] sm:$0xf]
      %v621 = vld [vmem:[%s610 + $0x28] sm:$0xf]
      %v622 = vld [vmem:[%s610 + $0x2c] sm:$0xf]
      %v623 = vld [vmem:[%s610 + $0x30] sm:$0xf]
      %v624 = vld [vmem:[%s610 + $0x34] sm:$0xf]
      %v625 = vld [vmem:[%s610 + $0x38] sm:$0xf]
      %v626 = vld [vmem:[%s610 + $0x3c] sm:$0xf]
      %v627 = vld [vmem:[%s610 + $0x40] sm:$0xf]
      %v628 = vld [vmem:[%s610 + $0x44] sm:$0xf]
      %v629 = vld [vmem:[%s610 + $0x48] sm:$0xf]
      %v630 = vld [vmem:[%s610 + $0x4c] sm:$0xf]
      %v651 = vunpack.c.l.b16 %v611
      %v652 = vunpack.c.l.b16 %v612
      %v653 = vunpack.c.l.b16 %v613
      %v654 = vunpack.c.l.b16 %v614
      %v655 = vunpack.c.l.b16 %v615
      %v656 = vunpack.c.l.b16 %v616
      %v657 = vunpack.c.l.b16 %v617
      %v658 = vunpack.c.l.b16 %v618
      %v659 = vunpack.c.l.b16 %v619
      %v660 = vunpack.c.l.b16 %v620
      %v661 = vunpack.c.l.b16 %v621
      %v662 = vunpack.c.l.b16 %v622
      %v663 = vunpack.c.l.b16 %v623
      %v664 = vunpack.c.l.b16 %v624
      %v665 = vunpack.c.l.b16 %v625
      %v666 = vunpack.c.l.b16 %v626
      %v667 = vunpack.c.l.b16 %v627
      %v668 = vunpack.c.l.b16 %v628
      %v669 = vunpack.c.l.b16 %v629
      %v670 = vunpack.c.l.b16 %v630
      %v671 = vpack.c.b16 %v652, %v651
      %v672 = vpack.c.b16 %v654, %v653
      %v673 = vpack.c.b16 %v656, %v655
      %v674 = vpack.c.b16 %v658, %v657
      %v675 = vpack.c.b16 %v660, %v659
      %v676 = vpack.c.b16 %v662, %v661
      %v677 = vpack.c.b16 %v664, %v663
      %v678 = vpack.c.b16 %v666, %v665
      %v679 = vpack.c.b16 %v668, %v667
      %v680 = vpack.c.b16 %v670, %v669
      %691 = vmatprep.subr.bf16.mxu0 0
      %692 = vmatpush1.bf16.msra.mxu0 %v678
      %693 = vmatprep.subr.bf16.mxu0 0
      %694 = vmatpush1.bf16.msra.mxu0 %v677
      %695 = vmatprep.subr.bf16.mxu0 0
      %696 = vmatpush1.bf16.msra.mxu0 %v676
      %697 = vmatprep.subr.bf16.mxu0 0
      %698 = vmatpush1.bf16.msra.mxu0 %v675
      %699 = vmatprep.subr.bf16.mxu0 0
      %700 = vmatpush1.bf16.msra.mxu0 %v674
      %701 = vmatprep.subr.bf16.mxu0 0
      %702 = vmatpush1.bf16.msra.mxu0 %v673
      %703 = vmatprep.subr.bf16.mxu0 0
      %704 = vmatpush1.bf16.msra.mxu0 %v672
      %705 = vmatprep.subr.bf16.mxu0 0
      %706 = vmatpush1.bf16.msra.mxu0 %v671
      %707 = vmatprep.subr.bf16.mxu0 0
      %708 = vmatpush2.bf16.msra.mxu0 0
      %709 = vmatprep.subr.bf16.mxu0 0
      %710 = vmatpush2.bf16.msra.mxu0 0
      %711 = vmatprep.subr.bf16.mxu0 0
      %712 = vmatpush2.bf16.msra.mxu0 0
      %713 = vmatprep.subr.bf16.mxu0 0
      %714 = vmatpush2.bf16.msra.mxu0 0
      %715 = vmatprep.subr.bf16.mxu0 0
      %716 = vmatpush2.bf16.msra.mxu0 0
      %717 = vmatprep.subr.bf16.mxu0 0
      %718 = vmatpush2.bf16.msra.mxu0 0
      %719 = vmatprep.subr.bf16.mxu0 0
      %720 = vmatpush2.bf16.msra.mxu0 %v680
      %721 = vmatprep.subr.bf16.mxu0 0
      %722 = vmatpush2.bf16.msra.mxu0 %v679
      %723 = vmatprep.mubr.bf16.mxu0 %v410
      %724 = vmatmul.mubr.bf16.gmra.mxu0 %v342
      %v725 = vpop.f32.mrf.mxu0
      %v726 = vadd.f32 0.0, %v725
      %v727 = vpop.f32.mrf.mxu0
      %v728 = vpop.f32.mrf.mxu0
      %v729 = vadd.f32 0.0, %v728
      %v730 = vpop.f32.mrf.mxu0
      %731 = vmatprep.mubr.bf16.mxu0 %v413
      %732 = vmatmul.mubr.bf16.gmra.mxu0 %v344
      %v733 = vpop.f32.mrf.mxu0
      %v734 = vadd.f32 0.0, %v733
      %v735 = vpop.f32.mrf.mxu0
      %v736 = vpop.f32.mrf.mxu0
      %v737 = vadd.f32 0.0, %v736
      %v738 = vpop.f32.mrf.mxu0
      %739 = vdwg.mxu0
      %vm744 = vcmask 1046528
      %v745 = vrot.slane %v726, 1
      %v746 = vrot.slane %v729, 1
      %v747 = vsel %vm744, %v745, %v746
      %v748 = vrot.slane %v734, 1
      %v749 = vsel %vm744, %v746, %v748
      %v750 = vrot.slane %v737, 1
      %v751 = vsel %vm744, %v748, %v750
      %v756 = vsel %vm744, %v750, 0.0
      %v757 = vadd.s32 %v281, 1
      %v758 = vadd.s32 %v282, 1
      %v759 = vadd.s32 %v283, 1
      %v760 = vadd.s32 %v284, 1
      %vm761 = vcmp.ge.s32.totalorder %v757, 0
      %vm762 = vcmp.ge.s32.totalorder %v758, 0
      %vm763 = vcmp.ge.s32.totalorder %v759, 0
      %vm764 = vcmp.ge.s32.totalorder %v760, 0
      %vm765 = vcmp.lt.s32.totalorder %v757, 16
      %vm766 = vcmp.lt.s32.totalorder %v758, 16
      %vm767 = vcmp.lt.s32.totalorder %v759, 16
      %vm768 = vcmp.lt.s32.totalorder %v760, 16
      %vm769 = vmand %vm761, %vm765
      %vm770 = vmand %vm762, %vm766
      %vm771 = vmand %vm763, %vm767
      %vm772 = vmand %vm764, %vm768
      %v773 = vsel %vm769, %v747, 0.0
      %v774 = vsel %vm770, %v749, 0.0
      %v775 = vsel %vm771, %v751, 0.0
      %v776 = vsel %vm772, %v756, 0.0
      %v777 = vadd.f32 %v596, %v773
      %v778 = vadd.f32 %v599, %v774
      %v779 = vadd.f32 %v604, %v775
      %v780 = vadd.f32 %v607, %v776
      %v781 = vld [vmem:[%s2] sm:$0x1]
      %v783 = vlaneseq
      %v784 = vshrl.u32 %v783, 7
      %v785 = vsub.s32 0, %v784
      %v786 = vrot.slane %v781, %v785
      %v788 = vadd.f32 %v777, %v786
      %v789 = vadd.f32 %v778, %v786
      %v790 = vadd.f32 %v779, %v786
      %v791 = vadd.f32 %v780, %v786
      %v792 = vmax.f32 %v788, 0.0
      %v793 = vmax.f32 %v789, 0.0
      %v794 = vmax.f32 %v790, 0.0
      %v795 = vmax.f32 %v791, 0.0
      %v796 = vpack.c.bf16 %v793, %v792
      %v797 = vpack.c.bf16 %v795, %v794
      %s798 = scalar_lea.vmem %s3, 64
      %v799 = vld [vmem:[%s798] sm:$0xf]
      %v800 = vld [vmem:[%s798 + $0x4] sm:$0xf]
      %v801 = vld [vmem:[%s798 + $0x8] sm:$0xf]
      %v802 = vld [vmem:[%s798 + $0xc] sm:$0xf]
      %v803 = vld [vmem:[%s798 + $0x10] sm:$0xf]
      %v804 = vld [vmem:[%s798 + $0x14] sm:$0xf]
      %v805 = vld [vmem:[%s798 + $0x18] sm:$0xf]
      %v806 = vld [vmem:[%s798 + $0x1c] sm:$0xf]
      %v807 = vld [vmem:[%s798 + $0x20] sm:$0xf]
      %v808 = vld [vmem:[%s798 + $0x24] sm:$0xf]
      %v809 = vld [vmem:[%s798 + $0x28] sm:$0xf]
      %v810 = vld [vmem:[%s798 + $0x2c] sm:$0xf]
      %v811 = vld [vmem:[%s798 + $0x30] sm:$0xf]
      %v812 = vld [vmem:[%s798 + $0x34] sm:$0xf]
      %v813 = vld [vmem:[%s798 + $0x38] sm:$0xf]
      %v814 = vld [vmem:[%s798 + $0x3c] sm:$0xf]
      %v815 = vld [vmem:[%s3] sm:$0xf]
      %v816 = vld [vmem:[%s3 + $0x4] sm:$0xf]
      %v817 = vld [vmem:[%s3 + $0x8] sm:$0xf]
      %v818 = vld [vmem:[%s3 + $0xc] sm:$0xf]
      %v819 = vld [vmem:[%s3 + $0x10] sm:$0xf]
      %v820 = vld [vmem:[%s3 + $0x14] sm:$0xf]
      %v821 = vld [vmem:[%s3 + $0x18] sm:$0xf]
      %v822 = vld [vmem:[%s3 + $0x1c] sm:$0xf]
      %v823 = vld [vmem:[%s3 + $0x20] sm:$0xf]
      %v824 = vld [vmem:[%s3 + $0x24] sm:$0xf]
      %v825 = vld [vmem:[%s3 + $0x28] sm:$0xf]
      %v826 = vld [vmem:[%s3 + $0x2c] sm:$0xf]
      %v827 = vld [vmem:[%s3 + $0x30] sm:$0xf]
      %v828 = vld [vmem:[%s3 + $0x34] sm:$0xf]
      %v829 = vld [vmem:[%s3 + $0x38] sm:$0xf]
      %v830 = vld [vmem:[%s3 + $0x3c] sm:$0xf]
      %v847 = vunpack.c.l.b16 %v815
      %v848 = vunpack.c.l.b16 %v816
      %v849 = vunpack.c.l.b16 %v817
      %v850 = vunpack.c.l.b16 %v818
      %v851 = vunpack.c.l.b16 %v819
      %v852 = vunpack.c.l.b16 %v820
      %v853 = vunpack.c.l.b16 %v821
      %v854 = vunpack.c.l.b16 %v822
      %v855 = vunpack.c.l.b16 %v823
      %v856 = vunpack.c.l.b16 %v824
      %v857 = vunpack.c.l.b16 %v825
      %v858 = vunpack.c.l.b16 %v826
      %v859 = vunpack.c.l.b16 %v827
      %v860 = vunpack.c.l.b16 %v828
      %v861 = vunpack.c.l.b16 %v829
      %v862 = vunpack.c.l.b16 %v830
      %v863 = vpack.c.b16 %v848, %v847
      %v864 = vpack.c.b16 %v850, %v849
      %v865 = vpack.c.b16 %v852, %v851
      %v866 = vpack.c.b16 %v854, %v853
      %v867 = vpack.c.b16 %v856, %v855
      %v868 = vpack.c.b16 %v858, %v857
      %v869 = vpack.c.b16 %v860, %v859
      %v870 = vpack.c.b16 %v862, %v861
      %879 = vmatprep.subr.bf16.mxu0 0
      %880 = vmatpush1.bf16.msra.mxu0 %v870
      %881 = vmatprep.subr.bf16.mxu0 0
      %882 = vmatpush1.bf16.msra.mxu0 %v869
      %883 = vmatprep.subr.bf16.mxu0 0
      %884 = vmatpush1.bf16.msra.mxu0 %v868
      %885 = vmatprep.subr.bf16.mxu0 0
      %886 = vmatpush1.bf16.msra.mxu0 %v867
      %887 = vmatprep.subr.bf16.mxu0 0
      %888 = vmatpush1.bf16.msra.mxu0 %v866
      %889 = vmatprep.subr.bf16.mxu0 0
      %890 = vmatpush1.bf16.msra.mxu0 %v865
      %891 = vmatprep.subr.bf16.mxu0 0
      %892 = vmatpush1.bf16.msra.mxu0 %v864
      %893 = vmatprep.subr.bf16.mxu0 0
      %894 = vmatpush1.bf16.msra.mxu0 %v863
      %895 = vmatprep.subr.bf16.mxu0 0
      %896 = vmatpush2.bf16.msra.mxu0 0
      %897 = vmatprep.subr.bf16.mxu0 0
      %898 = vmatpush2.bf16.msra.mxu0 0
      %899 = vmatprep.subr.bf16.mxu0 0
      %900 = vmatpush2.bf16.msra.mxu0 0
      %901 = vmatprep.subr.bf16.mxu0 0
      %902 = vmatpush2.bf16.msra.mxu0 0
      %903 = vmatprep.subr.bf16.mxu0 0
      %904 = vmatpush2.bf16.msra.mxu0 0
      %905 = vmatprep.subr.bf16.mxu0 0
      %906 = vmatpush2.bf16.msra.mxu0 0
      %907 = vmatprep.subr.bf16.mxu0 0
      %908 = vmatpush2.bf16.msra.mxu0 0
      %909 = vmatprep.subr.bf16.mxu0 0
      %910 = vmatpush2.bf16.msra.mxu0 0
      %911 = vmatprep.mubr.bf16.mxu0 0
      %912 = vmatmul.mubr.bf16.gmra.mxu0 %v796
      %v913 = vpop.f32.mrf.mxu0
      %v914 = vadd.f32 0.0, %v913
      %v915 = vpop.f32.mrf.mxu0
      %v916 = vpop.f32.mrf.mxu0
      %v917 = vadd.f32 0.0, %v916
      %v918 = vpop.f32.mrf.mxu0
      %919 = vmatprep.mubr.bf16.mxu0 0
      %920 = vmatmul.mubr.bf16.gmra.mxu0 %v797
      %v921 = vpop.f32.mrf.mxu0
      %v922 = vadd.f32 0.0, %v921
      %v923 = vpop.f32.mrf.mxu0
      %v924 = vpop.f32.mrf.mxu0
      %v925 = vadd.f32 0.0, %v924
      %v926 = vpop.f32.mrf.mxu0
      %927 = vdwg.mxu0
      %v932 = vrot.slane %v914, 7
      %v933 = vrot.slane %v917, 7
      %v934 = vsel %vm468, %v932, %v933
      %v935 = vrot.slane %v922, 7
      %v936 = vsel %vm468, %v933, %v935
      %v937 = vrot.slane %v925, 7
      %v938 = vsel %vm468, %v935, %v937
      %v943 = vsel %vm468, 0.0, %v932
      %v944 = vsel %vm493, %v943, 0.0
      %v945 = vsel %vm494, %v934, 0.0
      %v946 = vsel %vm495, %v936, 0.0
      %v947 = vsel %vm496, %v938, 0.0
      %v964 = vunpack.c.l.b16 %v799
      %v965 = vunpack.c.l.b16 %v800
      %v966 = vunpack.c.l.b16 %v801
      %v967 = vunpack.c.l.b16 %v802
      %v968 = vunpack.c.l.b16 %v803
      %v969 = vunpack.c.l.b16 %v804
      %v970 = vunpack.c.l.b16 %v805
      %v971 = vunpack.c.l.b16 %v806
      %v972 = vunpack.c.l.b16 %v807
      %v973 = vunpack.c.l.b16 %v808
      %v974 = vunpack.c.l.b16 %v809
      %v975 = vunpack.c.l.b16 %v810
      %v976 = vunpack.c.l.b16 %v811
      %v977 = vunpack.c.l.b16 %v812
      %v978 = vunpack.c.l.b16 %v813
      %v979 = vunpack.c.l.b16 %v814
      %v980 = vpack.c.b16 %v965, %v964
      %v981 = vpack.c.b16 %v967, %v966
      %v982 = vpack.c.b16 %v969, %v968
      %v983 = vpack.c.b16 %v971, %v970
      %v984 = vpack.c.b16 %v973, %v972
      %v985 = vpack.c.b16 %v975, %v974
      %v986 = vpack.c.b16 %v977, %v976
      %v987 = vpack.c.b16 %v979, %v978
      %996 = vmatprep.subr.bf16.mxu0 0
      %997 = vmatpush1.bf16.msra.mxu0 %v987
      %998 = vmatprep.subr.bf16.mxu0 0
      %999 = vmatpush1.bf16.msra.mxu0 %v986
      %1000 = vmatprep.subr.bf16.mxu0 0
      %1001 = vmatpush1.bf16.msra.mxu0 %v985
      %1002 = vmatprep.subr.bf16.mxu0 0
      %1003 = vmatpush1.bf16.msra.mxu0 %v984
      %1004 = vmatprep.subr.bf16.mxu0 0
      %1005 = vmatpush1.bf16.msra.mxu0 %v983
      %1006 = vmatprep.subr.bf16.mxu0 0
      %1007 = vmatpush1.bf16.msra.mxu0 %v982
      %1008 = vmatprep.subr.bf16.mxu0 0
      %1009 = vmatpush1.bf16.msra.mxu0 %v981
      %1010 = vmatprep.subr.bf16.mxu0 0
      %1011 = vmatpush1.bf16.msra.mxu0 %v980
      %1012 = vmatprep.subr.bf16.mxu0 0
      %1013 = vmatpush2.bf16.msra.mxu0 0
      %1014 = vmatprep.subr.bf16.mxu0 0
      %1015 = vmatpush2.bf16.msra.mxu0 0
      %1016 = vmatprep.subr.bf16.mxu0 0
      %1017 = vmatpush2.bf16.msra.mxu0 0
      %1018 = vmatprep.subr.bf16.mxu0 0
      %1019 = vmatpush2.bf16.msra.mxu0 0
      %1020 = vmatprep.subr.bf16.mxu0 0
      %1021 = vmatpush2.bf16.msra.mxu0 0
      %1022 = vmatprep.subr.bf16.mxu0 0
      %1023 = vmatpush2.bf16.msra.mxu0 0
      %1024 = vmatprep.subr.bf16.mxu0 0
      %1025 = vmatpush2.bf16.msra.mxu0 0
      %1026 = vmatprep.subr.bf16.mxu0 0
      %1027 = vmatpush2.bf16.msra.mxu0 0
      %1028 = vmatprep.mubr.bf16.mxu0 0
      %1029 = vmatmul.mubr.bf16.gmra.mxu0 %v796
      %v1030 = vpop.f32.mrf.mxu0
      %v1031 = vadd.f32 %v944, %v1030
      %v1032 = vpop.f32.mrf.mxu0
      %v1033 = vpop.f32.mrf.mxu0
      %v1034 = vadd.f32 %v945, %v1033
      %v1035 = vpop.f32.mrf.mxu0
      %1036 = vmatprep.mubr.bf16.mxu0 0
      %1037 = vmatmul.mubr.bf16.gmra.mxu0 %v797
      %v1038 = vpop.f32.mrf.mxu0
      %v1039 = vadd.f32 %v946, %v1038
      %v1040 = vpop.f32.mrf.mxu0
      %v1041 = vpop.f32.mrf.mxu0
      %v1042 = vadd.f32 %v947, %v1041
      %v1043 = vpop.f32.mrf.mxu0
      %1044 = vdwg.mxu0
      %s1045 = scalar_lea.vmem %s3, 128
      %v1046 = vld [vmem:[%s1045] sm:$0xf]
      %v1047 = vld [vmem:[%s1045 + $0x4] sm:$0xf]
      %v1048 = vld [vmem:[%s1045 + $0x8] sm:$0xf]
      %v1049 = vld [vmem:[%s1045 + $0xc] sm:$0xf]
      %v1050 = vld [vmem:[%s1045 + $0x10] sm:$0xf]
      %v1051 = vld [vmem:[%s1045 + $0x14] sm:$0xf]
      %v1052 = vld [vmem:[%s1045 + $0x18] sm:$0xf]
      %v1053 = vld [vmem:[%s1045 + $0x1c] sm:$0xf]
      %v1054 = vld [vmem:[%s1045 + $0x20] sm:$0xf]
      %v1055 = vld [vmem:[%s1045 + $0x24] sm:$0xf]
      %v1056 = vld [vmem:[%s1045 + $0x28] sm:$0xf]
      %v1057 = vld [vmem:[%s1045 + $0x2c] sm:$0xf]
      %v1058 = vld [vmem:[%s1045 + $0x30] sm:$0xf]
      %v1059 = vld [vmem:[%s1045 + $0x34] sm:$0xf]
      %v1060 = vld [vmem:[%s1045 + $0x38] sm:$0xf]
      %v1061 = vld [vmem:[%s1045 + $0x3c] sm:$0xf]
      %v1078 = vunpack.c.l.b16 %v1046
      %v1079 = vunpack.c.l.b16 %v1047
      %v1080 = vunpack.c.l.b16 %v1048
      %v1081 = vunpack.c.l.b16 %v1049
      %v1082 = vunpack.c.l.b16 %v1050
      %v1083 = vunpack.c.l.b16 %v1051
      %v1084 = vunpack.c.l.b16 %v1052
      %v1085 = vunpack.c.l.b16 %v1053
      %v1086 = vunpack.c.l.b16 %v1054
      %v1087 = vunpack.c.l.b16 %v1055
      %v1088 = vunpack.c.l.b16 %v1056
      %v1089 = vunpack.c.l.b16 %v1057
      %v1090 = vunpack.c.l.b16 %v1058
      %v1091 = vunpack.c.l.b16 %v1059
      %v1092 = vunpack.c.l.b16 %v1060
      %v1093 = vunpack.c.l.b16 %v1061
      %v1094 = vpack.c.b16 %v1079, %v1078
      %v1095 = vpack.c.b16 %v1081, %v1080
      %v1096 = vpack.c.b16 %v1083, %v1082
      %v1097 = vpack.c.b16 %v1085, %v1084
      %v1098 = vpack.c.b16 %v1087, %v1086
      %v1099 = vpack.c.b16 %v1089, %v1088
      %v1100 = vpack.c.b16 %v1091, %v1090
      %v1101 = vpack.c.b16 %v1093, %v1092
      %1110 = vmatprep.subr.bf16.mxu0 0
      %1111 = vmatpush1.bf16.msra.mxu0 %v1101
      %1112 = vmatprep.subr.bf16.mxu0 0
      %1113 = vmatpush1.bf16.msra.mxu0 %v1100
      %1114 = vmatprep.subr.bf16.mxu0 0
      %1115 = vmatpush1.bf16.msra.mxu0 %v1099
      %1116 = vmatprep.subr.bf16.mxu0 0
      %1117 = vmatpush1.bf16.msra.mxu0 %v1098
      %1118 = vmatprep.subr.bf16.mxu0 0
      %1119 = vmatpush1.bf16.msra.mxu0 %v1097
      %1120 = vmatprep.subr.bf16.mxu0 0
      %1121 = vmatpush1.bf16.msra.mxu0 %v1096
      %1122 = vmatprep.subr.bf16.mxu0 0
      %1123 = vmatpush1.bf16.msra.mxu0 %v1095
      %1124 = vmatprep.subr.bf16.mxu0 0
      %1125 = vmatpush1.bf16.msra.mxu0 %v1094
      %1126 = vmatprep.subr.bf16.mxu0 0
      %1127 = vmatpush2.bf16.msra.mxu0 0
      %1128 = vmatprep.subr.bf16.mxu0 0
      %1129 = vmatpush2.bf16.msra.mxu0 0
      %1130 = vmatprep.subr.bf16.mxu0 0
      %1131 = vmatpush2.bf16.msra.mxu0 0
      %1132 = vmatprep.subr.bf16.mxu0 0
      %1133 = vmatpush2.bf16.msra.mxu0 0
      %1134 = vmatprep.subr.bf16.mxu0 0
      %1135 = vmatpush2.bf16.msra.mxu0 0
      %1136 = vmatprep.subr.bf16.mxu0 0
      %1137 = vmatpush2.bf16.msra.mxu0 0
      %1138 = vmatprep.subr.bf16.mxu0 0
      %1139 = vmatpush2.bf16.msra.mxu0 0
      %1140 = vmatprep.subr.bf16.mxu0 0
      %1141 = vmatpush2.bf16.msra.mxu0 0
      %1142 = vmatprep.mubr.bf16.mxu0 0
      %1143 = vmatmul.mubr.bf16.gmra.mxu0 %v796
      %v1144 = vpop.f32.mrf.mxu0
      %v1145 = vadd.f32 0.0, %v1144
      %v1146 = vpop.f32.mrf.mxu0
      %v1147 = vpop.f32.mrf.mxu0
      %v1148 = vadd.f32 0.0, %v1147
      %v1149 = vpop.f32.mrf.mxu0
      %1150 = vmatprep.mubr.bf16.mxu0 0
      %1151 = vmatmul.mubr.bf16.gmra.mxu0 %v797
      %v1152 = vpop.f32.mrf.mxu0
      %v1153 = vadd.f32 0.0, %v1152
      %v1154 = vpop.f32.mrf.mxu0
      %v1155 = vpop.f32.mrf.mxu0
      %v1156 = vadd.f32 0.0, %v1155
      %v1157 = vpop.f32.mrf.mxu0
      %1158 = vdwg.mxu0
      %v1163 = vrot.slane %v1145, 1
      %v1164 = vrot.slane %v1148, 1
      %v1165 = vsel %vm744, %v1163, %v1164
      %v1166 = vrot.slane %v1153, 1
      %v1167 = vsel %vm744, %v1164, %v1166
      %v1168 = vrot.slane %v1156, 1
      %v1169 = vsel %vm744, %v1166, %v1168
      %v1174 = vsel %vm744, %v1168, 0.0
      %v1175 = vsel %vm769, %v1165, 0.0
      %v1176 = vsel %vm770, %v1167, 0.0
      %v1177 = vsel %vm771, %v1169, 0.0
      %v1178 = vsel %vm772, %v1174, 0.0
      %v1179 = vadd.f32 %v1031, %v1175
      %v1180 = vadd.f32 %v1034, %v1176
      %v1181 = vadd.f32 %v1039, %v1177
      %v1182 = vadd.f32 %v1042, %v1178
      %v1183 = vld [vmem:[%s4] sm:$0x1]
      %v1185 = vlaneseq
      %v1186 = vshrl.u32 %v1185, 7
      %v1187 = vsub.s32 0, %v1186
      %v1188 = vrot.slane %v1183, %v1187
      %v1190 = vadd.f32 %v1179, %v1188
      %v1191 = vadd.f32 %v1180, %v1188
      %v1192 = vadd.f32 %v1181, %v1188
      %v1193 = vadd.f32 %v1182, %v1188
      %v1194 = vadd.f32 %v792, %v1190
      %v1195 = vadd.f32 %v793, %v1191
      %v1196 = vadd.f32 %v794, %v1192
      %v1197 = vadd.f32 %v795, %v1193
      %v1198 = vmax.f32 %v1194, 0.0
      %v1199 = vmax.f32 %v1195, 0.0
      %v1200 = vmax.f32 %v1196, 0.0
      %v1201 = vmax.f32 %v1197, 0.0
      %1202 = vst [vmem:[%s229] sm:$0xff] %v1198
      %1203 = vst [vmem:[%s229 + $0x8] sm:$0xff] %v1199
      %1204 = vst [vmem:[%s229 + $0x10] sm:$0xff] %v1200
      %1205 = vst [vmem:[%s229 + $0x18] sm:$0xff] %v1201
      %s1206 = smul.u32 4, %s16
      %p1207 = scmp.lt.s32.totalorder %s1206, 7
      %s1208 = scalar_select %p1207, %s1206, 7
      %s1209 = smul.addr %s1208, 8
      %s1210 = scalar_lea.vmem %s5, %s1209
      // Predicated region
      $region41: #{decblock_forward.1} parent=39 // pred_check
        %p1211 = pneg %p144
      $region42: #{decblock_forward.1} parent=39 // pred_check_branch
        %1213 = sbr.rel (%p1211) target = $region44
      $region43: #{decblock_forward.1} parent=39 // pred_region
        %s1214 = smul.u32 4, %s16
      $region44: #{decblock_forward.1} parent=39 // pred_fallthru
        _
    $region40: #{decblock_forward.1} parent=5 // pred_fallthru
      _
    %p1215 = scmp.le.s32.totalorder 2, %s11
    // Predicated region
    $region45: #{decblock_forward.1} parent=5 // pred_check
      %p1216 = pneg %p1215
    $region46: #{decblock_forward.1} parent=5 // pred_check_branch
      %1218 = sbr.rel (%p1216) target = $region48
    $region47: #{decblock_forward.1} parent=5 // pred_region
      %s1219 = ssub.s32 %s11, 2
      // Predicated region
      $region49: #{decblock_forward.1} parent=47 // pred_check
        %p1220 = pneg %p150
      $region50: #{decblock_forward.1} parent=47 // pred_check_branch
        %1222 = sbr.rel (%p1220) target = $region52
      $region51: #{decblock_forward.1} parent=47 // pred_region
        %s1223 = smul.u32 4, %s17
        %p1224 = scmp.lt.s32.totalorder %s1223, 7
        %s1225 = scalar_select %p1224, %s1223, 7
        %s1226 = smul.addr %s1225, 8
        %s1227 = scalar_lea.vmem %s5, %s1226
      $region52: #{decblock_forward.1} parent=47 // pred_fallthru
        _
    $region48: #{decblock_forward.1} parent=5 // pred_fallthru
      _
  $region6: #{decblock_forward.1} parent=0 // loop_footer
    %s15 = sadd.s32 1, %s11
  $region7: #{decblock_forward.1} parent=0 // loop_footer_branch
    %10 = sbr.rel target = $region3
  $region8: #{decblock_forward.1} parent=0 // loop_exit
    _

</llo_original>
